<compile_context>
chip_gen: v7x
topology: tpu7x:2x2x1
jax: 0.10.0
libtpu: 0.0.40
codegen_flags: <defaults>
</compile_context>

<pallas_src>
import functools

import numpy as np
import jax
import jax.numpy as jnp
from jax import lax
from jax.experimental import pallas as pl
from jax.experimental.pallas import tpu as pltpu


# ----------------------------------------------------------------------------
# Fused kernel
# ----------------------------------------------------------------------------
def _residual_upsample_kernel(xp_ref, w1_ref, b1_ref, w2_ref, b2_ref,
                              wt_ref, bt_ref, o_ref, *, th, hh, ww, cc):
    """One row tile: out rows [2*r0, 2*(r0+th)) of the full block.

    xp_ref: (1, H+6, W*C)       x lane-flattened, zero-padded by 3 rows each side
    w1_ref: (3, W*C, W*C)       conv1: one block-banded matrix per kh tap
    b1_ref: (1, W*C)
    w2_ref: (3, W*C, W*C)       conv2 (its column zero-padding folded into the band)
    b2_ref: (1, W*C)
    wt_ref: (2, 2, W*C, 2*W*C)  convT sub-pixel bands, indexed [row_parity, row_tap]
    bt_ref: (1, 2*W*C)          2*b_ct tiled over output columns
    o_ref : (1, th, 4*W*C)      lane-dense: row t = [out row 2t | out row 2t+1]
    """
    r0 = pl.multiple_of(pl.program_id(1) * th, th)       # first output row of this tile

    # x rows [r0-3, r0+th+2]  (halo of 3: conv1, conv2 and convT each consume one row)
    rows_x = xp_ref[0, pl.ds(r0, th + 6), :]                                 # (th+6, W*C)

    # ---- conv1 + bias + ReLU : h1 rows [r0-2, r0+th+1] ------------------------------
    acc1 = jnp.dot(rows_x[0:th + 4], w1_ref[0], preferred_element_type=jnp.float32)
    acc1 += jnp.dot(rows_x[1:th + 5], w1_ref[1], preferred_element_type=jnp.float32)
    acc1 += jnp.dot(rows_x[2:th + 6], w1_ref[2], preferred_element_type=jnp.float32)
    h1 = jnp.maximum(acc1 + b1_ref[...], 0.0)                                # (th+4, W*C)
    # rows outside the image must be exactly zero: they are conv2's zero row-padding
    g1 = lax.broadcasted_iota(jnp.int32, h1.shape, 0) + (r0 - 2)
    h1 = jnp.where((g1 >= 0) & (g1 < hh), h1, 0.0)

    # ---- conv2 + bias + residual pre-add : s rows [r0-1, r0+th] ---------------------
    acc2 = jnp.dot(h1[0:th + 2], w2_ref[0], preferred_element_type=jnp.float32)
    acc2 += jnp.dot(h1[1:th + 3], w2_ref[1], preferred_element_type=jnp.float32)
    acc2 += jnp.dot(h1[2:th + 4], w2_ref[2], preferred_element_type=jnp.float32)
    s = acc2 + b2_ref[...] + rows_x[2:th + 4]                                # (th+2, W*C)
    # rows outside the image must be exactly zero: they are convT's zero row-padding
    g2 = lax.broadcasted_iota(jnp.int32, s.shape, 0) + (r0 - 1)
    s = jnp.where((g2 >= 0) & (g2 < hh), s, 0.0)

    # ---- convT (sub-pixel row parities) + 2*b_ct + ReLU -----------------------------
    # TODO(synk): on v6e/v7x, K-stack the two row taps into one matmul (or use the v7x
    # MRB accumulate) to better fill the 256-deep MXU.
    phases = []
    for py in range(2):                                   # output row parity (2t / 2t+1)
        a = jnp.dot(s[py:py + th], wt_ref[py, 0], preferred_element_type=jnp.float32)
        a += jnp.dot(s[py + 1:py + 1 + th], wt_ref[py, 1],
                     preferred_element_type=jnp.float32)
        phases.append(jnp.maximum(a + bt_ref[...], 0.0))                     # (th, 2*W*C)

    # lane-dense store: [row 2t | row 2t+1] along lanes -> full unmasked vst
    o_ref[0] = jnp.concatenate(phases, axis=-1).astype(o_ref.dtype)


# ----------------------------------------------------------------------------
# Host-side weight preprocessing: PyTorch layouts -> banded 2-D matrices
# ----------------------------------------------------------------------------
def _conv3_band(w_hwio, width):
    """3x3 'same' conv on a lane-flattened row -> 3 banded (W*Cin, W*Cout) matrices.

    band[kh][j*Cin+ci, u*Cout+co] = w[kh, j-u+1, ci, co] for |j-u| <= 1; the conv's
    column zero-padding is folded in by simply omitting out-of-range input columns.
    """
    w = np.asarray(w_hwio, np.float32)                    # (3, 3, Cin, Cout)
    cin, cout = w.shape[2], w.shape[3]
    band = np.zeros((3, width * cin, width * cout), np.float32)
    for kh in range(3):
        for kw in range(3):
            for u in range(width):
                j = u + kw - 1
                if 0 <= j < width:
                    band[kh, j * cin:(j + 1) * cin,
                         u * cout:(u + 1) * cout] = w[kh, kw]
    return jnp.asarray(band)


def _convT_band(w_iohw, width):
    """ConvTranspose2d(k=4, s=2, p=1) weight (Cin, Cout, 4, 4) -> sub-pixel banded
    weights of shape (2, 2, W*Cin, 2*W*Cout).

    Output row 2t+py uses s rows t+py+i-1 (i in {0,1}) with kernel row ky = 3-2i-py;
    output column 2u+px uses s columns u+px+dxi-1 (dxi in {0,1}) with kx = 3-2*dxi-px.
    The column zero-padding is folded in by omitting out-of-range columns.
    """
    w = np.asarray(w_iohw, np.float32)                    # (Cin, Cout, 4, 4)
    cin, cout = w.shape[0], w.shape[1]
    band = np.zeros((2, 2, width * cin, 2 * width * cout), np.float32)
    for py in range(2):
        for i in range(2):
            ky = 3 - 2 * i - py
            for px in range(2):
                for dxi in range(2):
                    kx = 3 - 2 * dxi - px
                    for u in range(width):
                        j = u + px + dxi - 1
                        if 0 <= j < width:
                            band[py, i, j * cin:(j + 1) * cin,
                                 (2 * u + px) * cout:(2 * u + px + 1) * cout] = w[:, :, ky, kx]
    return jnp.asarray(band)


def make_params(w1_oihw, b1, w2_oihw, b2, wct_iohw, bct, width):
    c = int(w1_oihw.shape[0])
    w1_hwio = jnp.transpose(w1_oihw, (2, 3, 1, 0))        # OIHW -> HWIO
    w2_hwio = jnp.transpose(w2_oihw, (2, 3, 1, 0))
    return {
        "w1_band": _conv3_band(w1_hwio, width),
        "b1_row": jnp.tile(jnp.asarray(b1, jnp.float32), width).reshape(1, width * c),
        "w2_band": _conv3_band(w2_hwio, width),
        "b2_row": jnp.tile(jnp.asarray(b2, jnp.float32), width).reshape(1, width * c),
        "wt_band": _convT_band(wct_iohw, width),
        "bt_row": jnp.tile(2.0 * jnp.asarray(bct, jnp.float32),
                           2 * width).reshape(1, 2 * width * c),
    }


# ----------------------------------------------------------------------------
# Public wrapper (NCHW in / NCHW out, like the PyTorch module)
# ----------------------------------------------------------------------------
def _pick_row_tile(height, row_tile):
    if height <= row_tile:
        return height
    for t in range(row_tile, 7, -1):          # largest 8-multiple tile dividing H
        if t % 8 == 0 and height % t == 0:
            return t
    # TODO(synk): masked remainder tile instead of the whole-image fallback.
    return height


def residual_upsample_block(x_nchw, params, *, row_tile=256):
    """relu(convT(conv2(relu(conv1(x)))) + convT(x)), NCHW -> NCHW (2x spatial)."""
    x = jnp.transpose(x_nchw, (0, 2, 3, 1))                       # NHWC
    n, h, w, c = x.shape
    th = _pick_row_tile(h, row_tile)

    # single rows-only halo pad (3 rows each side); columns are handled in the bands.
    xp = jnp.pad(x.reshape(n, h, w * c), ((0, 0), (3, 3), (0, 0)))

    # VMEM budget from actual block bytes (x2 for double buffering) + headroom.
    f32 = 4
    block_bytes = f32 * ((h + 6) * w * c                 # xp (whole padded image per n)
                         + 2 * 3 * (w * c) ** 2          # w1_band + w2_band
                         + 4 * (w * c) * (2 * w * c)     # wt_band
                         + 4 * w * c                     # biases
                         + th * 4 * w * c)               # output tile
    vmem_limit = int(min(64 << 20, max(32 << 20, 2 * block_bytes + (8 << 20))))

    out_flat = pl.pallas_call(
        functools.partial(_residual_upsample_kernel, th=th, hh=h, ww=w, cc=c),
        out_shape=jax.ShapeDtypeStruct((n, h, 4 * w * c), x.dtype),
        grid=(n, h // th),
        in_specs=[
            pl.BlockSpec((1, h + 6, w * c), lambda i, j: (i, 0, 0)),
            # constant-index weight / bias blocks (small here; resident across h steps)
            pl.BlockSpec((3, w * c, w * c), lambda i, j: (0, 0, 0)),
            pl.BlockSpec((1, w * c), lambda i, j: (0, 0)),
            pl.BlockSpec((3, w * c, w * c), lambda i, j: (0, 0, 0)),
            pl.BlockSpec((1, w * c), lambda i, j: (0, 0)),
            pl.BlockSpec((2, 2, w * c, 2 * w * c), lambda i, j: (0, 0, 0, 0)),
            pl.BlockSpec((1, 2 * w * c), lambda i, j: (0, 0)),
        ],
        out_specs=pl.BlockSpec((1, th, 4 * w * c), lambda i, j: (i, j, 0)),
        compiler_params=pltpu.CompilerParams(
            dimension_semantics=("parallel", "parallel"),
            vmem_limit_bytes=vmem_limit),
    )(xp, params["w1_band"], params["b1_row"], params["w2_band"],
      params["b2_row"], params["wt_band"], params["bt_row"])

    out = out_flat.reshape(n, 2 * h, 2 * w, c)            # free: identical memory order
    return jnp.transpose(out, (0, 3, 1, 2))               # back to NCHW


# ----------------------------------------------------------------------------
# Reference (pure JAX) and self-test
# ----------------------------------------------------------------------------
def _reference_nhwc(x, w1_oihw, b1, w2_oihw, b2, wct_iohw, bct):
    dn = ("NHWC", "HWIO", "NHWC")

    def conv(z, w, b, pad, dil):
        return lax.conv_general_dilated(
            z, w, (1, 1), ((pad, pad), (pad, pad)), lhs_dilation=dil,
            dimension_numbers=dn, precision=lax.Precision.HIGHEST) + b

    w1 = jnp.transpose(w1_oihw, (2, 3, 1, 0))
    w2 = jnp.transpose(w2_oihw, (2, 3, 1, 0))
    # ConvTranspose2d(k=4,s=2,p=1) == dilate-by-2, pad 2, correlate with flipped kernel.
    wct = jnp.transpose(jnp.flip(wct_iohw, (2, 3)), (2, 3, 0, 1))
    h = jnp.maximum(conv(x, w1, b1, 1, (1, 1)), 0.0)
    h = conv(h, w2, b2, 1, (1, 1))
    ct = lambda z: conv(z, wct, bct, 2, (2, 2))
    return jnp.maximum(ct(h) + ct(x), 0.0)


if __name__ == "__main__":
    N, C, H, W = 2, 4, 16, 16        # in_channels == out_channels (module requirement)
    key = jax.random.PRNGKey(0)
    ks = jax.random.split(key, 7)

    # Parameters generated directly in the PyTorch layouts.
    w1_oihw = 0.2 * jax.random.normal(ks[0], (C, C, 3, 3), jnp.float32)
    b1 = 0.1 * jax.random.normal(ks[1], (C,), jnp.float32)
    w2_oihw = 0.2 * jax.random.normal(ks[2], (C, C, 3, 3), jnp.float32)
    b2 = 0.1 * jax.random.normal(ks[3], (C,), jnp.float32)
    wct_iohw = 0.2 * jax.random.normal(ks[4], (C, C, 4, 4), jnp.float32)  # (in, out, kh, kw)
    bct = 0.1 * jax.random.normal(ks[5], (C,), jnp.float32)
    x = jax.random.normal(ks[6], (N, C, H, W), jnp.float32)               # NCHW

    params = make_params(w1_oihw, b1, w2_oihw, b2, wct_iohw, bct, W)

    fwd = jax.jit(residual_upsample_block)
    out = jax.block_until_ready(fwd(x, params))
    assert out.shape == (N, C, 2 * H, 2 * W), out.shape

    ref = _reference_nhwc(jnp.transpose(x, (0, 2, 3, 1)),
                          w1_oihw, b1, w2_oihw, b2, wct_iohw, bct)
    got = jnp.transpose(out, (0, 2, 3, 1))
    err = float(jnp.max(jnp.abs(got - ref)))
    assert jnp.allclose(got, ref, atol=2e-2, rtol=2e-2), f"max abs err {err}"

    print("KERNEL_OK")
</pallas_src>

<mosaic_0001>
module attributes {stable_mosaic.version = 11 : i64} {
  func.func @_residual_upsample_kernel(%arg0: i32, %arg1: i32, %arg2: memref<1x22x64xf32, #tpu.memory_space<vmem>>, %arg3: memref<3x64x64xf32, #tpu.memory_space<vmem>>, %arg4: memref<1x64xf32, #tpu.memory_space<vmem>>, %arg5: memref<3x64x64xf32, #tpu.memory_space<vmem>>, %arg6: memref<1x64xf32, #tpu.memory_space<vmem>>, %arg7: memref<2x2x64x128xf32, #tpu.memory_space<vmem>>, %arg8: memref<1x128xf32, #tpu.memory_space<vmem>>, %arg9: memref<1x16x256xf32, #tpu.memory_space<vmem>>) attributes {dimension_semantics = [#tpu.dimension_semantics<parallel>, #tpu.dimension_semantics<parallel>], iteration_bounds = array<i64: 2, 1>, scalar_prefetch = 0 : i64, scratch_operands = 0 : i64, tpu.core_type = #tpu.core_type<tc>, window_params = [{transform_indices = @transform_0, window_bounds = array<i64: 1, 22, 64>}, {pipeline_mode = #tpu.pipeline_mode<synchronous>, transform_indices = @transform_1, window_bounds = array<i64: 3, 64, 64>}, {pipeline_mode = #tpu.pipeline_mode<synchronous>, transform_indices = @transform_2, window_bounds = array<i64: 1, 64>}, {pipeline_mode = #tpu.pipeline_mode<synchronous>, transform_indices = @transform_3, window_bounds = array<i64: 3, 64, 64>}, {pipeline_mode = #tpu.pipeline_mode<synchronous>, transform_indices = @transform_4, window_bounds = array<i64: 1, 64>}, {pipeline_mode = #tpu.pipeline_mode<synchronous>, transform_indices = @transform_5, window_bounds = array<i64: 2, 2, 64, 128>}, {pipeline_mode = #tpu.pipeline_mode<synchronous>, transform_indices = @transform_6, window_bounds = array<i64: 1, 128>}, {transform_indices = @transform_7, window_bounds = array<i64: 1, 16, 256>}]} {
    %c16_i32 = arith.constant 16 : i32
    %0 = arith.muli %arg1, %c16_i32 : i32
    %1 = tpu.assume_multiple %0, 16 : i32
    %c0 = arith.constant 0 : index
    %2 = arith.index_cast %1 : i32 to index
    %c0_0 = arith.constant 0 : index
    %3 = vector.load %arg2[%c0, %2, %c0_0] : memref<1x22x64xf32, #tpu.memory_space<vmem>>, vector<1x22x64xf32>
    %4 = vector.shape_cast %3 : vector<1x22x64xf32> to vector<22x64xf32>
    %5 = vector.extract_strided_slice %4 {offsets = [0, 0], sizes = [20, 64], strides = [1, 1]} : vector<22x64xf32> to vector<20x64xf32>
    %c0_1 = arith.constant 0 : index
    %c0_2 = arith.constant 0 : index
    %c0_3 = arith.constant 0 : index
    %6 = vector.load %arg3[%c0_1, %c0_2, %c0_3] : memref<3x64x64xf32, #tpu.memory_space<vmem>>, vector<1x64x64xf32>
    %7 = vector.shape_cast %6 : vector<1x64x64xf32> to vector<64x64xf32>
    %cst = arith.constant dense<0.000000e+00> : vector<20x64xf32>
    %8 = tpu.matmul %5, %7, %cst {dimension_numbers = #tpu.dot_dimension_numbers<[1], [0], [0], [1], [0, 0, 1, 1], [], []>} : vector<20x64xf32>, vector<64x64xf32>, vector<20x64xf32> -> vector<20x64xf32>
    %9 = vector.extract_strided_slice %4 {offsets = [1, 0], sizes = [20, 64], strides = [1, 1]} : vector<22x64xf32> to vector<20x64xf32>
    %c1 = arith.constant 1 : index
    %c0_4 = arith.constant 0 : index
    %c0_5 = arith.constant 0 : index
    %10 = vector.load %arg3[%c1, %c0_4, %c0_5] : memref<3x64x64xf32, #tpu.memory_space<vmem>>, vector<1x64x64xf32>
    %11 = vector.shape_cast %10 : vector<1x64x64xf32> to vector<64x64xf32>
    %cst_6 = arith.constant dense<0.000000e+00> : vector<20x64xf32>
    %12 = tpu.matmul %9, %11, %cst_6 {dimension_numbers = #tpu.dot_dimension_numbers<[1], [0], [0], [1], [0, 0, 1, 1], [], []>} : vector<20x64xf32>, vector<64x64xf32>, vector<20x64xf32> -> vector<20x64xf32>
    %13 = arith.addf %8, %12 : vector<20x64xf32>
    %14 = vector.extract_strided_slice %4 {offsets = [2, 0], sizes = [20, 64], strides = [1, 1]} : vector<22x64xf32> to vector<20x64xf32>
    %c2 = arith.constant 2 : index
    %c0_7 = arith.constant 0 : index
    %c0_8 = arith.constant 0 : index
    %15 = vector.load %arg3[%c2, %c0_7, %c0_8] : memref<3x64x64xf32, #tpu.memory_space<vmem>>, vector<1x64x64xf32>
    %16 = vector.shape_cast %15 : vector<1x64x64xf32> to vector<64x64xf32>
    %cst_9 = arith.constant dense<0.000000e+00> : vector<20x64xf32>
    %17 = tpu.matmul %14, %16, %cst_9 {dimension_numbers = #tpu.dot_dimension_numbers<[1], [0], [0], [1], [0, 0, 1, 1], [], []>} : vector<20x64xf32>, vector<64x64xf32>, vector<20x64xf32> -> vector<20x64xf32>
    %18 = arith.addf %13, %17 : vector<20x64xf32>
    %c0_10 = arith.constant 0 : index
    %c0_11 = arith.constant 0 : index
    %19 = vector.load %arg4[%c0_10, %c0_11] : memref<1x64xf32, #tpu.memory_space<vmem>>, vector<1x64xf32>
    %20 = vector.broadcast %19 : vector<1x64xf32> to vector<20x64xf32>
    %21 = arith.addf %18, %20 : vector<20x64xf32>
    %cst_12 = arith.constant 0.000000e+00 : f32
    %22 = vector.broadcast %cst_12 : f32 to vector<20x64xf32>
    %23 = arith.maximumf %21, %22 : vector<20x64xf32>
    %24 = tpu.iota {dimensions = array<i32: 0>} : vector<20x64xi32>
    %c2_i32 = arith.constant 2 : i32
    %25 = arith.subi %1, %c2_i32 : i32
    %26 = vector.broadcast %25 : i32 to vector<20x64xi32>
    %27 = arith.addi %24, %26 : vector<20x64xi32>
    %c0_i32 = arith.constant 0 : i32
    %28 = vector.broadcast %c0_i32 : i32 to vector<20x64xi32>
    %29 = arith.cmpi sge, %27, %28 : vector<20x64xi32>
    %c16_i32_13 = arith.constant 16 : i32
    %30 = vector.broadcast %c16_i32_13 : i32 to vector<20x64xi32>
    %31 = arith.cmpi slt, %27, %30 : vector<20x64xi32>
    %32 = arith.andi %29, %31 : vector<20x64xi1>
    %cst_14 = arith.constant 0.000000e+00 : f32
    %33 = vector.broadcast %cst_14 : f32 to vector<20x64xf32>
    %34 = arith.select %32, %23, %33 : vector<20x64xi1>, vector<20x64xf32>
    %35 = vector.extract_strided_slice %34 {offsets = [0, 0], sizes = [18, 64], strides = [1, 1]} : vector<20x64xf32> to vector<18x64xf32>
    %c0_15 = arith.constant 0 : index
    %c0_16 = arith.constant 0 : index
    %c0_17 = arith.constant 0 : index
    %36 = vector.load %arg5[%c0_15, %c0_16, %c0_17] : memref<3x64x64xf32, #tpu.memory_space<vmem>>, vector<1x64x64xf32>
    %37 = vector.shape_cast %36 : vector<1x64x64xf32> to vector<64x64xf32>
    %cst_18 = arith.constant dense<0.000000e+00> : vector<18x64xf32>
    %38 = tpu.matmul %35, %37, %cst_18 {dimension_numbers = #tpu.dot_dimension_numbers<[1], [0], [0], [1], [0, 0, 1, 1], [], []>} : vector<18x64xf32>, vector<64x64xf32>, vector<18x64xf32> -> vector<18x64xf32>
    %39 = vector.extract_strided_slice %34 {offsets = [1, 0], sizes = [18, 64], strides = [1, 1]} : vector<20x64xf32> to vector<18x64xf32>
    %c1_19 = arith.constant 1 : index
    %c0_20 = arith.constant 0 : index
    %c0_21 = arith.constant 0 : index
    %40 = vector.load %arg5[%c1_19, %c0_20, %c0_21] : memref<3x64x64xf32, #tpu.memory_space<vmem>>, vector<1x64x64xf32>
    %41 = vector.shape_cast %40 : vector<1x64x64xf32> to vector<64x64xf32>
    %cst_22 = arith.constant dense<0.000000e+00> : vector<18x64xf32>
    %42 = tpu.matmul %39, %41, %cst_22 {dimension_numbers = #tpu.dot_dimension_numbers<[1], [0], [0], [1], [0, 0, 1, 1], [], []>} : vector<18x64xf32>, vector<64x64xf32>, vector<18x64xf32> -> vector<18x64xf32>
    %43 = arith.addf %38, %42 : vector<18x64xf32>
    %44 = vector.extract_strided_slice %34 {offsets = [2, 0], sizes = [18, 64], strides = [1, 1]} : vector<20x64xf32> to vector<18x64xf32>
    %c2_23 = arith.constant 2 : index
    %c0_24 = arith.constant 0 : index
    %c0_25 = arith.constant 0 : index
    %45 = vector.load %arg5[%c2_23, %c0_24, %c0_25] : memref<3x64x64xf32, #tpu.memory_space<vmem>>, vector<1x64x64xf32>
    %46 = vector.shape_cast %45 : vector<1x64x64xf32> to vector<64x64xf32>
    %cst_26 = arith.constant dense<0.000000e+00> : vector<18x64xf32>
    %47 = tpu.matmul %44, %46, %cst_26 {dimension_numbers = #tpu.dot_dimension_numbers<[1], [0], [0], [1], [0, 0, 1, 1], [], []>} : vector<18x64xf32>, vector<64x64xf32>, vector<18x64xf32> -> vector<18x64xf32>
    %48 = arith.addf %43, %47 : vector<18x64xf32>
    %c0_27 = arith.constant 0 : index
    %c0_28 = arith.constant 0 : index
    %49 = vector.load %arg6[%c0_27, %c0_28] : memref<1x64xf32, #tpu.memory_space<vmem>>, vector<1x64xf32>
    %50 = vector.broadcast %49 : vector<1x64xf32> to vector<18x64xf32>
    %51 = arith.addf %48, %50 : vector<18x64xf32>
    %52 = vector.extract_strided_slice %4 {offsets = [2, 0], sizes = [18, 64], strides = [1, 1]} : vector<22x64xf32> to vector<18x64xf32>
    %53 = arith.addf %51, %52 : vector<18x64xf32>
    %54 = tpu.iota {dimensions = array<i32: 0>} : vector<18x64xi32>
    %c1_i32 = arith.constant 1 : i32
    %55 = arith.subi %1, %c1_i32 : i32
    %56 = vector.broadcast %55 : i32 to vector<18x64xi32>
    %57 = arith.addi %54, %56 : vector<18x64xi32>
    %c0_i32_29 = arith.constant 0 : i32
    %58 = vector.broadcast %c0_i32_29 : i32 to vector<18x64xi32>
    %59 = arith.cmpi sge, %57, %58 : vector<18x64xi32>
    %c16_i32_30 = arith.constant 16 : i32
    %60 = vector.broadcast %c16_i32_30 : i32 to vector<18x64xi32>
    %61 = arith.cmpi slt, %57, %60 : vector<18x64xi32>
    %62 = arith.andi %59, %61 : vector<18x64xi1>
    %cst_31 = arith.constant 0.000000e+00 : f32
    %63 = vector.broadcast %cst_31 : f32 to vector<18x64xf32>
    %64 = arith.select %62, %53, %63 : vector<18x64xi1>, vector<18x64xf32>
    %65 = vector.extract_strided_slice %64 {offsets = [0, 0], sizes = [16, 64], strides = [1, 1]} : vector<18x64xf32> to vector<16x64xf32>
    %c0_32 = arith.constant 0 : index
    %c0_33 = arith.constant 0 : index
    %c0_34 = arith.constant 0 : index
    %c0_35 = arith.constant 0 : index
    %66 = vector.load %arg7[%c0_32, %c0_33, %c0_34, %c0_35] : memref<2x2x64x128xf32, #tpu.memory_space<vmem>>, vector<1x1x64x128xf32>
    %67 = vector.shape_cast %66 : vector<1x1x64x128xf32> to vector<64x128xf32>
    %cst_36 = arith.constant dense<0.000000e+00> : vector<16x128xf32>
    %68 = tpu.matmul %65, %67, %cst_36 {dimension_numbers = #tpu.dot_dimension_numbers<[1], [0], [0], [1], [0, 0, 1, 1], [], []>} : vector<16x64xf32>, vector<64x128xf32>, vector<16x128xf32> -> vector<16x128xf32>
    %69 = vector.extract_strided_slice %64 {offsets = [1, 0], sizes = [16, 64], strides = [1, 1]} : vector<18x64xf32> to vector<16x64xf32>
    %c0_37 = arith.constant 0 : index
    %c1_38 = arith.constant 1 : index
    %c0_39 = arith.constant 0 : index
    %c0_40 = arith.constant 0 : index
    %70 = vector.load %arg7[%c0_37, %c1_38, %c0_39, %c0_40] : memref<2x2x64x128xf32, #tpu.memory_space<vmem>>, vector<1x1x64x128xf32>
    %71 = vector.shape_cast %70 : vector<1x1x64x128xf32> to vector<64x128xf32>
    %cst_41 = arith.constant dense<0.000000e+00> : vector<16x128xf32>
    %72 = tpu.matmul %69, %71, %cst_41 {dimension_numbers = #tpu.dot_dimension_numbers<[1], [0], [0], [1], [0, 0, 1, 1], [], []>} : vector<16x64xf32>, vector<64x128xf32>, vector<16x128xf32> -> vector<16x128xf32>
    %73 = arith.addf %68, %72 : vector<16x128xf32>
    %c0_42 = arith.constant 0 : index
    %c0_43 = arith.constant 0 : index
    %74 = vector.load %arg8[%c0_42, %c0_43] : memref<1x128xf32, #tpu.memory_space<vmem>>, vector<1x128xf32>
    %75 = vector.broadcast %74 : vector<1x128xf32> to vector<16x128xf32>
    %76 = arith.addf %73, %75 : vector<16x128xf32>
    %cst_44 = arith.constant 0.000000e+00 : f32
    %77 = vector.broadcast %cst_44 : f32 to vector<16x128xf32>
    %78 = arith.maximumf %76, %77 : vector<16x128xf32>
    %79 = vector.extract_strided_slice %64 {offsets = [1, 0], sizes = [16, 64], strides = [1, 1]} : vector<18x64xf32> to vector<16x64xf32>
    %c1_45 = arith.constant 1 : index
    %c0_46 = arith.constant 0 : index
    %c0_47 = arith.constant 0 : index
    %c0_48 = arith.constant 0 : index
    %80 = vector.load %arg7[%c1_45, %c0_46, %c0_47, %c0_48] : memref<2x2x64x128xf32, #tpu.memory_space<vmem>>, vector<1x1x64x128xf32>
    %81 = vector.shape_cast %80 : vector<1x1x64x128xf32> to vector<64x128xf32>
    %cst_49 = arith.constant dense<0.000000e+00> : vector<16x128xf32>
    %82 = tpu.matmul %79, %81, %cst_49 {dimension_numbers = #tpu.dot_dimension_numbers<[1], [0], [0], [1], [0, 0, 1, 1], [], []>} : vector<16x64xf32>, vector<64x128xf32>, vector<16x128xf32> -> vector<16x128xf32>
    %83 = vector.extract_strided_slice %64 {offsets = [2, 0], sizes = [16, 64], strides = [1, 1]} : vector<18x64xf32> to vector<16x64xf32>
    %c1_50 = arith.constant 1 : index
    %c1_51 = arith.constant 1 : index
    %c0_52 = arith.constant 0 : index
    %c0_53 = arith.constant 0 : index
    %84 = vector.load %arg7[%c1_50, %c1_51, %c0_52, %c0_53] : memref<2x2x64x128xf32, #tpu.memory_space<vmem>>, vector<1x1x64x128xf32>
    %85 = vector.shape_cast %84 : vector<1x1x64x128xf32> to vector<64x128xf32>
    %cst_54 = arith.constant dense<0.000000e+00> : vector<16x128xf32>
    %86 = tpu.matmul %83, %85, %cst_54 {dimension_numbers = #tpu.dot_dimension_numbers<[1], [0], [0], [1], [0, 0, 1, 1], [], []>} : vector<16x64xf32>, vector<64x128xf32>, vector<16x128xf32> -> vector<16x128xf32>
    %87 = arith.addf %82, %86 : vector<16x128xf32>
    %c0_55 = arith.constant 0 : index
    %c0_56 = arith.constant 0 : index
    %88 = vector.load %arg8[%c0_55, %c0_56] : memref<1x128xf32, #tpu.memory_space<vmem>>, vector<1x128xf32>
    %89 = vector.broadcast %88 : vector<1x128xf32> to vector<16x128xf32>
    %90 = arith.addf %87, %89 : vector<16x128xf32>
    %cst_57 = arith.constant 0.000000e+00 : f32
    %91 = vector.broadcast %cst_57 : f32 to vector<16x128xf32>
    %92 = arith.maximumf %90, %91 : vector<16x128xf32>
    %93 = tpu.concatenate %78, %92 in 1 : vector<16x128xf32>, vector<16x128xf32> -> vector<16x256xf32>
    %c0_58 = arith.constant 0 : index
    %c0_59 = arith.constant 0 : index
    %c0_60 = arith.constant 0 : index
    %94 = vector.load %arg9[%c0_58, %c0_59, %c0_60] : memref<1x16x256xf32, #tpu.memory_space<vmem>>, vector<1x16x256xf32>
    %95 = vector.shape_cast %94 : vector<1x16x256xf32> to vector<16x256xf32>
    %96 = vector.shape_cast %93 : vector<16x256xf32> to vector<1x16x256xf32>
    tpu.vector_store %arg9[%c0_58, %c0_59, %c0_60], %96 {strides = array<i32>} : memref<1x16x256xf32, #tpu.memory_space<vmem>>, vector<1x16x256xf32>,
    return
  }
  func.func @transform_0(%arg0: i32, %arg1: i32) -> (i32, i32, i32) {
    %c0_i32 = arith.constant 0 : i32
    %c0_i32_0 = arith.constant 0 : i32
    %c0_i32_1 = arith.constant 0 : i32
    return %arg0, %c0_i32, %c0_i32_0 : i32, i32, i32
  }
  func.func @transform_1(%arg0: i32, %arg1: i32) -> (i32, i32, i32) {
    %c0_i32 = arith.constant 0 : i32
    %c0_i32_0 = arith.constant 0 : i32
    %c0_i32_1 = arith.constant 0 : i32
    %c0_i32_2 = arith.constant 0 : i32
    return %c0_i32, %c0_i32_0, %c0_i32_1 : i32, i32, i32
  }
  func.func @transform_2(%arg0: i32, %arg1: i32) -> (i32, i32) {
    %c0_i32 = arith.constant 0 : i32
    %c0_i32_0 = arith.constant 0 : i32
    %c0_i32_1 = arith.constant 0 : i32
    return %c0_i32, %c0_i32_0 : i32, i32
  }
  func.func @transform_3(%arg0: i32, %arg1: i32) -> (i32, i32, i32) {
    %c0_i32 = arith.constant 0 : i32
    %c0_i32_0 = arith.constant 0 : i32
    %c0_i32_1 = arith.constant 0 : i32
    %c0_i32_2 = arith.constant 0 : i32
    return %c0_i32, %c0_i32_0, %c0_i32_1 : i32, i32, i32
  }
  func.func @transform_4(%arg0: i32, %arg1: i32) -> (i32, i32) {
    %c0_i32 = arith.constant 0 : i32
    %c0_i32_0 = arith.constant 0 : i32
    %c0_i32_1 = arith.constant 0 : i32
    return %c0_i32, %c0_i32_0 : i32, i32
  }
  func.func @transform_5(%arg0: i32, %arg1: i32) -> (i32, i32, i32, i32) {
    %c0_i32 = arith.constant 0 : i32
    %c0_i32_0 = arith.constant 0 : i32
    %c0_i32_1 = arith.constant 0 : i32
    %c0_i32_2 = arith.constant 0 : i32
    %c0_i32_3 = arith.constant 0 : i32
    return %c0_i32, %c0_i32_0, %c0_i32_1, %c0_i32_2 : i32, i32, i32, i32
  }
  func.func @transform_6(%arg0: i32, %arg1: i32) -> (i32, i32) {
    %c0_i32 = arith.constant 0 : i32
    %c0_i32_0 = arith.constant 0 : i32
    %c0_i32_1 = arith.constant 0 : i32
    return %c0_i32, %c0_i32_0 : i32, i32
  }
  func.func @transform_7(%arg0: i32, %arg1: i32) -> (i32, i32, i32) {
    %c0_i32 = arith.constant 0 : i32
    %c0_i32_0 = arith.constant 0 : i32
    return %arg0, %arg1, %c0_i32 : i32, i32, i32
  }
}

</mosaic_0001>

<llo_original>
// kernel: residual_upsample_block.1
$region0: #{residual_upsample_block.1}
  #allocation0 [shape = 'u32[]', space=smem, size = 0x4, offset = 0x4, fixed_abs, tag = 'smem constant byte address 0x4 - core index']
  #allocation1 [shape = 'u32[144,128]{1,0:T(1,128)}', space=vmem, size = 0x12000, scoped, tag = 'internal scratch']
  %s0 = inlined_call_operand.vmem [shape: f32[2,22,64], index: 0, kind: input, shape index: {}]
  %s1 = inlined_call_operand.vmem [shape: f32[3,64,64], index: 1, kind: input, shape index: {}]
  %s2 = inlined_call_operand.vmem [shape: f32[1,64], index: 2, kind: input, shape index: {}]
  %s3 = inlined_call_operand.hbm [shape: f32[3,64,64], index: 3, kind: input, shape index: {}]
  %s4 = inlined_call_operand.vmem [shape: f32[1,64], index: 4, kind: input, shape index: {}]
  %s5 = inlined_call_operand.vmem [shape: f32[2,2,64,128], index: 5, kind: input, shape index: {}]
  %s6 = inlined_call_operand.vmem [shape: f32[1,128], index: 6, kind: input, shape index: {}]
  %s7 = inlined_call_operand.vmem [shape: f32[2,16,256], index: 7, kind: output, shape index: {}]
  %s8 = sld [smem:[#allocation0]]
  $region65: #{residual_upsample_block.1} parent=0
    _
  %s10 = ssub.s32 1, %s8
  %s11 = scalar_select 0, %s10, %s8
  $region1: #{residual_upsample_block.1} parent=0
    #allocation2 [shape = 'u8[98304]{0}', space=vmem, size = 0x18000, scoped, tag = 'input window, operand 3, single buffered']
    #allocation3 [shape = 's32[2]{0}', space=sflag, size = 0x8, scoped, tag = 'scoped memory for residual_upsample_block.1']
    %12 = vsyncpa [#allocation3], 0
    loop: start=0, step=1, limit=4
    $region2: #{residual_upsample_block.1} parent=1 // loop_pre_header
      _
    $region3: #{residual_upsample_block.1} parent=1 // loop_header
      %s14 = sphi 0, %s18
      %p15 = scmp.ge.s32.totalorder %s14, 4
      %s21 = sphi 0, %s33
      %s22 = sphi 0, %s29
      %s23 = sphi 0, %s21
      %s24 = sphi 0, %s22
      %s25 = sphi 0, %s23
      %s26 = sphi 0, %s24
      %s36 = sphi 0, %s38
      %s39 = sphi 0, %s36
      %s40 = sphi 0, %s39
      %s56 = sphi 0, %s40
      %s60 = sphi 0, %s60
      %s62 = sphi 0, %s60
      %s63 = sphi 0, %s62
      %s77 = sphi 0, %s63
      %s81 = sphi 0, %s81
      %s83 = sphi 0, %s81
      %s84 = sphi 0, %s83
      %s98 = sphi 0, %s84
      %s102 = sphi 0, %s102
      %s104 = sphi 0, %s102
      %s105 = sphi 0, %s104
      %s119 = sphi 0, %s105
      %s123 = sphi 0, %s123
      %s125 = sphi 0, %s123
      %s126 = sphi 0, %s125
      %s140 = sphi 0, %s126
      %s144 = sphi 0, %s144
      %s146 = sphi 0, %s144
      %s147 = sphi 0, %s146
      %s161 = sphi 0, %s147
      %s165 = sphi 0, %s165
      %s167 = sphi 0, %s165
      %s168 = sphi 0, %s167
      %s182 = sphi 0, %s168
      %s190 = sphi 0, %s192
      %s193 = sphi 0, %s190
      %s194 = sphi 0, %s193
      %s210 = sphi 0, %s194
    $region4: #{residual_upsample_block.1} parent=1 // loop_header_branch
      %17 = sbr.rel (%p15) target = $region8
    $region5: #{residual_upsample_block.1} parent=1 // loop_body
      %s19 = ssub.s32 %s14, 1
      %s20 = ssub.s32 %s14, 2
      %s27 = sadd.s32 1, %s22
      %p28 = scmp.ge.s32.totalorder %s27, 1
      %s29 = scalar_select %p28, 0, %s27
      %s30 = sadd.s32 1, %s21
      %s31 = scalar_select %p28, %s30, %s21
      %p32 = scmp.ge.s32.totalorder %s31, 2
      %s33 = scalar_select %p32, 0, %s31
      %s34 = ssub.s32 %s21, %s33
      %p35 = scmp.eq.s32.totalorder %s34, 0
      %s37 = sadd.s32 %s36, 1
      %s38 = scalar_select %p35, %s36, %s37
      %p41 = pneg %p35
      %p42 = scmp.eq.s32.totalorder %s14, 1
      %p43 = por %p41, %p42
      %p44 = scmp.ne.s32.totalorder %s36, %s39
      %p45 = scmp.eq.s32.totalorder %s14, 0
      %p46 = por %p44, %p45
      %p47 = scmp.ne.s32.totalorder %s36, %s39
      %p48 = scmp.eq.s32.totalorder %s19, 1
      %p49 = por %p47, %p48
      %p50 = scmp.ne.s32.totalorder %s39, %s40
      %p51 = scmp.eq.s32.totalorder %s19, 0
      %p52 = por %p50, %p51
      %p53 = scmp.ne.s32.totalorder %s39, %s40
      %p54 = scmp.eq.s32.totalorder %s20, 1
      %p55 = por %p53, %p54
      %p57 = scmp.ne.s32.totalorder %s40, %s56
      %p58 = scmp.eq.s32.totalorder %s20, 0
      %p59 = por %p57, %p58
      %s61 = sadd.s32 %s60, 1
      %p64 = scmp.eq.s32.totalorder %s14, 1
      %p65 = scmp.ne.s32.totalorder %s60, %s62
      %p66 = scmp.eq.s32.totalorder %s14, 0
      %p67 = por %p65, %p66
      %p68 = scmp.ne.s32.totalorder %s60, %s62
      %p69 = scmp.eq.s32.totalorder %s19, 1
      %p70 = por %p68, %p69
      %p71 = scmp.ne.s32.totalorder %s62, %s63
      %p72 = scmp.eq.s32.totalorder %s19, 0
      %p73 = por %p71, %p72
      %p74 = scmp.ne.s32.totalorder %s62, %s63
      %p75 = scmp.eq.s32.totalorder %s20, 1
      %p76 = por %p74, %p75
      %p78 = scmp.ne.s32.totalorder %s63, %s77
      %p79 = scmp.eq.s32.totalorder %s20, 0
      %p80 = por %p78, %p79
      %s82 = sadd.s32 %s81, 1
      %p85 = scmp.eq.s32.totalorder %s14, 1
      %p86 = scmp.ne.s32.totalorder %s81, %s83
      %p87 = scmp.eq.s32.totalorder %s14, 0
      %p88 = por %p86, %p87
      %p89 = scmp.ne.s32.totalorder %s81, %s83
      %p90 = scmp.eq.s32.totalorder %s19, 1
      %p91 = por %p89, %p90
      %p92 = scmp.ne.s32.totalorder %s83, %s84
      %p93 = scmp.eq.s32.totalorder %s19, 0
      %p94 = por %p92, %p93
      %p95 = scmp.ne.s32.totalorder %s83, %s84
      %p96 = scmp.eq.s32.totalorder %s20, 1
      %p97 = por %p95, %p96
      %p99 = scmp.ne.s32.totalorder %s84, %s98
      %p100 = scmp.eq.s32.totalorder %s20, 0
      %p101 = por %p99, %p100
      %s103 = sadd.s32 %s102, 1
      %p106 = scmp.eq.s32.totalorder %s14, 1
      %p107 = scmp.ne.s32.totalorder %s102, %s104
      %p108 = scmp.eq.s32.totalorder %s14, 0
      %p109 = por %p107, %p108
      %p110 = scmp.ne.s32.totalorder %s102, %s104
      %p111 = scmp.eq.s32.totalorder %s19, 1
      %p112 = por %p110, %p111
      %p113 = scmp.ne.s32.totalorder %s104, %s105
      %p114 = scmp.eq.s32.totalorder %s19, 0
      %p115 = por %p113, %p114
      %p116 = scmp.ne.s32.totalorder %s104, %s105
      %p117 = scmp.eq.s32.totalorder %s20, 1
      %p118 = por %p116, %p117
      %p120 = scmp.ne.s32.totalorder %s105, %s119
      %p121 = scmp.eq.s32.totalorder %s20, 0
      %p122 = por %p120, %p121
      %s124 = sadd.s32 %s123, 1
      %p127 = scmp.eq.s32.totalorder %s14, 1
      %p128 = scmp.ne.s32.totalorder %s123, %s125
      %p129 = scmp.eq.s32.totalorder %s14, 0
      %p130 = por %p128, %p129
      %p131 = scmp.ne.s32.totalorder %s123, %s125
      %p132 = scmp.eq.s32.totalorder %s19, 1
      %p133 = por %p131, %p132
      %p134 = scmp.ne.s32.totalorder %s125, %s126
      %p135 = scmp.eq.s32.totalorder %s19, 0
      %p136 = por %p134, %p135
      %p137 = scmp.ne.s32.totalorder %s125, %s126
      %p138 = scmp.eq.s32.totalorder %s20, 1
      %p139 = por %p137, %p138
      %p141 = scmp.ne.s32.totalorder %s126, %s140
      %p142 = scmp.eq.s32.totalorder %s20, 0
      %p143 = por %p141, %p142
      %s145 = sadd.s32 %s144, 1
      %p148 = scmp.eq.s32.totalorder %s14, 1
      %p149 = scmp.ne.s32.totalorder %s144, %s146
      %p150 = scmp.eq.s32.totalorder %s14, 0
      %p151 = por %p149, %p150
      %p152 = scmp.ne.s32.totalorder %s144, %s146
      %p153 = scmp.eq.s32.totalorder %s19, 1
      %p154 = por %p152, %p153
      %p155 = scmp.ne.s32.totalorder %s146, %s147
      %p156 = scmp.eq.s32.totalorder %s19, 0
      %p157 = por %p155, %p156
      %p158 = scmp.ne.s32.totalorder %s146, %s147
      %p159 = scmp.eq.s32.totalorder %s20, 1
      %p160 = por %p158, %p159
      %p162 = scmp.ne.s32.totalorder %s147, %s161
      %p163 = scmp.eq.s32.totalorder %s20, 0
      %p164 = por %p162, %p163
      %s166 = sadd.s32 %s165, 1
      %p169 = scmp.eq.s32.totalorder %s14, 1
      %p170 = scmp.ne.s32.totalorder %s165, %s167
      %p171 = scmp.eq.s32.totalorder %s14, 0
      %p172 = por %p170, %p171
      %p173 = scmp.ne.s32.totalorder %s165, %s167
      %p174 = scmp.eq.s32.totalorder %s19, 1
      %p175 = por %p173, %p174
      %p176 = scmp.ne.s32.totalorder %s167, %s168
      %p177 = scmp.eq.s32.totalorder %s19, 0
      %p178 = por %p176, %p177
      %p179 = scmp.ne.s32.totalorder %s167, %s168
      %p180 = scmp.eq.s32.totalorder %s20, 1
      %p181 = por %p179, %p180
      %p183 = scmp.ne.s32.totalorder %s168, %s182
      %p184 = scmp.eq.s32.totalorder %s20, 0
      %p185 = por %p183, %p184
      %s186 = ssub.s32 %s21, %s33
      %s187 = ssub.s32 %s22, %s29
      %s188 = sor.u32 %s186, %s187
      %p189 = scmp.eq.s32.totalorder %s188, 0
      %s191 = sadd.s32 %s190, 1
      %s192 = scalar_select %p189, %s190, %s191
      %p195 = pneg %p189
      %p196 = scmp.eq.s32.totalorder %s14, 1
      %p197 = por %p195, %p196
      %p198 = scmp.ne.s32.totalorder %s190, %s193
      %p199 = scmp.eq.s32.totalorder %s14, 0
      %p200 = por %p198, %p199
      %p201 = scmp.ne.s32.totalorder %s190, %s193
      %p202 = scmp.eq.s32.totalorder %s19, 1
      %p203 = por %p201, %p202
      %p204 = scmp.ne.s32.totalorder %s193, %s194
      %p205 = scmp.eq.s32.totalorder %s19, 0
      %p206 = por %p204, %p205
      %p207 = scmp.ne.s32.totalorder %s193, %s194
      %p208 = scmp.eq.s32.totalorder %s20, 1
      %p209 = por %p207, %p208
      %p211 = scmp.ne.s32.totalorder %s194, %s210
      %p212 = scmp.eq.s32.totalorder %s20, 0
      %p213 = por %p211, %p212
      %p214 = scmp.le.s32.totalorder 1, %s14
      %p215 = scmp.lt.s32.totalorder %s14, 3
      %p216 = pnand %p214, %p215
      %p217 = pneg %p216
      // Predicated region
      $region9: #{residual_upsample_block.1} parent=5 // pred_check
        _
      $region10: #{residual_upsample_block.1} parent=5 // pred_check_branch
        %219 = sbr.rel (%p216) target = $region12
      $region11: #{residual_upsample_block.1} parent=5 // pred_region
        %s220 = ssub.s32 %s14, 1
        // Predicated region
        $region13: #{residual_upsample_block.1} parent=11 // pred_check
          %p221 = pneg %p73
        $region14: #{residual_upsample_block.1} parent=11 // pred_check_branch
          %223 = sbr.rel (%p221) target = $region16
        $region15: #{residual_upsample_block.1} parent=11 // pred_region
          _
        $region16: #{residual_upsample_block.1} parent=11 // pred_fallthru
          _
        // Predicated region
        $region17: #{residual_upsample_block.1} parent=11 // pred_check
          %p224 = pneg %p94
        $region18: #{residual_upsample_block.1} parent=11 // pred_check_branch
          %226 = sbr.rel (%p224) target = $region20
        $region19: #{residual_upsample_block.1} parent=11 // pred_region
          _
        $region20: #{residual_upsample_block.1} parent=11 // pred_fallthru
          _
        // Predicated region
        $region21: #{residual_upsample_block.1} parent=11 // pred_check
          %p227 = pneg %p115
        $region22: #{residual_upsample_block.1} parent=11 // pred_check_branch
          %229 = sbr.rel (%p227) target = $region24
        $region23: #{residual_upsample_block.1} parent=11 // pred_region
          %s231 = ssub.s32 3072, 3072
          %232 = vsyncadd [#allocation3], %s231
          %s233 = sshll.u32 [#allocation2], 4
          %s234 = int_to_ptr.vmem [resolvable:$true] %s233
          %239 = dma.hbm_to_vmem [thread:$0]  %s3, 3072, %s234, [#allocation3], 128, 128, 8
        $region24: #{residual_upsample_block.1} parent=11 // pred_fallthru
          _
        // Predicated region
        $region25: #{residual_upsample_block.1} parent=11 // pred_check
          %p240 = pneg %p136
        $region26: #{residual_upsample_block.1} parent=11 // pred_check_branch
          %242 = sbr.rel (%p240) target = $region28
        $region27: #{residual_upsample_block.1} parent=11 // pred_region
          _
        $region28: #{residual_upsample_block.1} parent=11 // pred_fallthru
          _
        // Predicated region
        $region29: #{residual_upsample_block.1} parent=11 // pred_check
          %p243 = pneg %p157
        $region30: #{residual_upsample_block.1} parent=11 // pred_check_branch
          %245 = sbr.rel (%p243) target = $region32
        $region31: #{residual_upsample_block.1} parent=11 // pred_region
          _
        $region32: #{residual_upsample_block.1} parent=11 // pred_fallthru
          _
        // Predicated region
        $region33: #{residual_upsample_block.1} parent=11 // pred_check
          %p246 = pneg %p178
        $region34: #{residual_upsample_block.1} parent=11 // pred_check_branch
          %248 = sbr.rel (%p246) target = $region36
        $region35: #{residual_upsample_block.1} parent=11 // pred_region
          _
        $region36: #{residual_upsample_block.1} parent=11 // pred_fallthru
          _
      $region12: #{residual_upsample_block.1} parent=5 // pred_fallthru
        _
      %p249 = scmp.lt.s32.totalorder %s14, 2
      // Predicated region
      $region37: #{residual_upsample_block.1} parent=5 // pred_check
        %p250 = pneg %p249
      $region38: #{residual_upsample_block.1} parent=5 // pred_check_branch
        %252 = sbr.rel (%p250) target = $region40
      $region39: #{residual_upsample_block.1} parent=5 // pred_region
        // Predicated region
        $region41: #{residual_upsample_block.1} parent=39 // pred_check
          %p253 = pneg %p46
        $region42: #{residual_upsample_block.1} parent=39 // pred_check_branch
          %255 = sbr.rel (%p253) target = $region44
        $region43: #{residual_upsample_block.1} parent=39 // pred_region
          %p256 = scmp.lt.s32.totalorder %s21, 1
          %s257 = scalar_select %p256, %s21, 1
          %s258 = smul.addr %s257, 3
          %s259 = smul.addr %s258, 8
          %s260 = scalar_lea.vmem %s0, %s259
        $region44: #{residual_upsample_block.1} parent=39 // pred_fallthru
          _
      $region40: #{residual_upsample_block.1} parent=5 // pred_fallthru
        _
      %p261 = scmp.le.s32.totalorder 1, %s14
      %p262 = scmp.lt.s32.totalorder %s14, 3
      %p263 = pnand %p261, %p262
      %p264 = pneg %p263
      // Predicated region
      $region45: #{residual_upsample_block.1} parent=5 // pred_check
        _
      $region46: #{residual_upsample_block.1} parent=5 // pred_check_branch
        %266 = sbr.rel (%p263) target = $region48
      $region47: #{residual_upsample_block.1} parent=5 // pred_region
        %s267 = ssub.s32 %s14, 1
        // Predicated region
        $region49: #{residual_upsample_block.1} parent=47 // pred_check
          %p268 = pneg %p115
        $region50: #{residual_upsample_block.1} parent=47 // pred_check_branch
          %270 = sbr.rel (%p268) target = $region52
        $region51: #{residual_upsample_block.1} parent=47 // pred_region
          %271 = dma.done [#allocation3], 3072
        $region52: #{residual_upsample_block.1} parent=47 // pred_fallthru
          _
        %p272 = scmp.lt.s32.totalorder %s23, 1
        %s273 = scalar_select %p272, %s23, 1
        %s274 = smul.addr %s273, 3
        %s275 = smul.addr %s274, 8
        %s276 = scalar_lea.vmem %s0, %s275
        %p277 = pneg %p52
        %p278 = pneg %p49
        %p279 = pneg %p73
        %p280 = pneg %p70
        %p281 = pneg %p94
        %p282 = pneg %p91
        %p283 = pneg %p115
        %p284 = pneg %p112
        %p285 = pneg %p136
        %p286 = pneg %p133
        %p287 = pneg %p157
        %p288 = pneg %p154
        %p289 = pneg %p178
        %p290 = pneg %p175
        %p291 = pneg %p206
        %p292 = pneg %p203
        %s293 = smul.u32 2, %s24
        %p294 = scmp.lt.s32.totalorder %s23, 1
        %s295 = scalar_select %p294, %s23, 1
        %p296 = scmp.lt.s32.totalorder %s293, 1
        %s297 = scalar_select %p296, %s293, 1
        %s298 = smul.addr %s297, 2
        %s299 = smul.addr %s295, 4
        %s300 = sadd.s32 %s298, %s299
        %s301 = smul.addr %s300, 8
        %s302 = scalar_lea.vmem %s7, %s301
        %p303 = scmp.lt.s32.totalorder %s23, 1
        %s304 = scalar_select %p303, %s23, 1
        %s305 = smul.addr %s304, 3
        %s306 = smul.addr %s305, 8
        %s307 = scalar_lea.vmem %s0, %s306
        %s308 = smul.u32 2, %s24
        %p309 = scmp.lt.s32.totalorder %s23, 1
        %s310 = scalar_select %p309, %s23, 1
        %p311 = scmp.lt.s32.totalorder %s308, 1
        %s312 = scalar_select %p311, %s308, 1
        %s313 = smul.addr %s312, 2
        %s314 = smul.addr %s310, 4
        %s315 = sadd.s32 %s313, %s314
        %s316 = smul.addr %s315, 8
        %s317 = scalar_lea.vmem %s7, %s316
        %s318 = smul.u32 2, %s24
        %s319 = smul.u32 %s24, 16
        %s320 = scalar_lea.vmem %s307, %s319
        %v321 = vld [vmem:[%s320] sm:$0xff]
        %v322 = vld [vmem:[%s320 + $0x8] sm:$0xff]
        %v323 = vld [vmem:[%s320 + $0x10] sm:$0x3f]
        %v324 = vld [vmem:[%s1] sm:$0xff]
        %v325 = vld [vmem:[%s1 + $0x8] sm:$0xff]
        %v326 = vld [vmem:[%s1 + $0x10] sm:$0xff]
        %v327 = vld [vmem:[%s1 + $0x18] sm:$0xff]
        %v328 = vld [vmem:[%s1 + $0x20] sm:$0xff]
        %v329 = vld [vmem:[%s1 + $0x28] sm:$0xff]
        %v330 = vld [vmem:[%s1 + $0x30] sm:$0xff]
        %v331 = vld [vmem:[%s1 + $0x38] sm:$0xff]
        %s332 = scalar_lea.vmem %s1, 64
        %v333 = vld [vmem:[%s332] sm:$0xff]
        %v334 = vld [vmem:[%s332 + $0x8] sm:$0xff]
        %v335 = vld [vmem:[%s332 + $0x10] sm:$0xff]
        %v336 = vld [vmem:[%s332 + $0x18] sm:$0xff]
        %v337 = vld [vmem:[%s332 + $0x20] sm:$0xff]
        %v338 = vld [vmem:[%s332 + $0x28] sm:$0xff]
        %v339 = vld [vmem:[%s332 + $0x30] sm:$0xff]
        %v340 = vld [vmem:[%s332 + $0x38] sm:$0xff]
        %vm344 = vcmask 1046528
        %v345 = vrot.slane %v321, 1
        %v346 = vrot.slane %v322, 1
        %v347 = vsel %vm344, %v345, %v346
        %v348 = vrot.slane %v323, 1
        %v349 = vsel %vm344, %v346, %v348
        %vm350 = vcmask 523264
        %v351 = vsel %vm350, %v347, 0
        %v353 = vsel %vm350, %v349, 0
        %v355 = vsel %vm350, %v348, 0
        %357 = vmatprep.subr.mxu0 0.0
        %358 = vmatpush1.msra.mxu0 %v333
        %359 = vmatprep.subr.mxu0 0.0
        %360 = vmatpush1.msra.mxu0 %v334
        %361 = vmatprep.subr.mxu0 0.0
        %362 = vmatpush1.msra.mxu0 %v335
        %363 = vmatprep.subr.mxu0 0.0
        %364 = vmatpush1.msra.mxu0 %v336
        %365 = vmatprep.subr.mxu0 0.0
        %366 = vmatpush1.msra.mxu0 %v337
        %367 = vmatprep.subr.mxu0 0.0
        %368 = vmatpush1.msra.mxu0 %v338
        %369 = vmatprep.subr.mxu0 0.0
        %370 = vmatpush1.msra.mxu0 %v339
        %371 = vmatprep.subr.mxu0 0.0
        %372 = vmatpush1.msra.mxu0 %v340
        %373 = vmatprep.subr.mxu0 0.0
        %374 = vmatpush1.msra.mxu0 0.0
        %375 = vmatprep.subr.mxu0 0.0
        %376 = vmatpush1.msra.mxu0 0.0
        %377 = vmatprep.subr.mxu0 0.0
        %378 = vmatpush1.msra.mxu0 0.0
        %379 = vmatprep.subr.mxu0 0.0
        %380 = vmatpush1.msra.mxu0 0.0
        %381 = vmatprep.subr.mxu0 0.0
        %382 = vmatpush1.msra.mxu0 0.0
        %383 = vmatprep.subr.mxu0 0.0
        %384 = vmatpush1.msra.mxu0 0.0
        %385 = vmatprep.subr.mxu0 0.0
        %386 = vmatpush1.msra.mxu0 0.0
        %387 = vmatprep.subr.mxu0 0.0
        %388 = vmatpush1.msra.mxu0 0.0
        %389 = vmatprep.subr.mxu0 0.0
        %390 = vmatpush1.msra.mxu0 0.0
        %391 = vmatprep.subr.mxu0 0.0
        %392 = vmatpush1.msra.mxu0 0.0
        %393 = vmatprep.subr.mxu0 0.0
        %394 = vmatpush1.msra.mxu0 0.0
        %395 = vmatprep.subr.mxu0 0.0
        %396 = vmatpush1.msra.mxu0 0.0
        %397 = vmatprep.subr.mxu0 0.0
        %398 = vmatpush1.msra.mxu0 0.0
        %399 = vmatprep.subr.mxu0 0.0
        %400 = vmatpush1.msra.mxu0 0.0
        %401 = vmatprep.subr.mxu0 0.0
        %402 = vmatpush1.msra.mxu0 0.0
        %403 = vmatprep.subr.mxu0 0.0
        %404 = vmatpush1.msra.mxu0 0.0
        %405 = vmatprep.subr.mxu0 0.0
        %406 = vmatpush1.msra.mxu0 0.0
        %407 = vmatprep.subr.mxu0 0.0
        %408 = vmatpush1.msra.mxu0 0.0
        %409 = vmatprep.subr.mxu0 0.0
        %410 = vmatpush1.msra.mxu0 0.0
        %411 = vmatprep.subr.mxu0 0.0
        %412 = vmatpush1.msra.mxu0 0.0
        %413 = vmatprep.subr.mxu0 0.0
        %414 = vmatpush1.msra.mxu0 0.0
        %415 = vmatprep.subr.mxu0 0.0
        %416 = vmatpush1.msra.mxu0 0.0
        %417 = vmatprep.subr.mxu0 0.0
        %418 = vmatpush1.msra.mxu0 0.0
        %419 = vmatprep.subr.mxu0 0.0
        %420 = vmatpush1.msra.mxu0 0.0
        %421 = vmatprep.mubr.f32.mxu0 0.0
        %422 = vmatmul.mubr.f32.gmra.mrb[0].mxu0 %v351
        %v423 = vpop.f32.mrb[0].mxu0
        %v424 = vadd.f32 0.0, %v423
        %v425 = vpop.f32.mrb[0].mxu0
        %426 = vmatprep.mubr.f32.mxu0 0.0
        %427 = vmatmul.mubr.f32.gmra.mrb[0].mxu0 %v353
        %v428 = vpop.f32.mrb[0].mxu0
        %v429 = vadd.f32 0.0, %v428
        %v430 = vpop.f32.mrb[0].mxu0
        %431 = vmatprep.mubr.f32.mxu0 0.0
        %432 = vmatmul.mubr.f32.gmra.mrb[0].mxu0 %v355
        %v433 = vpop.f32.mrb[0].mxu0
        %v434 = vadd.f32 0.0, %v433
        %v435 = vpop.f32.mrb[0].mxu0
        %436 = vdwg.mxu0
        %v437 = vsel %vm350, %v321, 0
        %v439 = vsel %vm350, %v322, 0
        %v441 = vsel %vm350, %v323, 0
        %443 = vmatprep.subr.mxu0 0.0
        %444 = vmatpush1.msra.mxu0 %v324
        %445 = vmatprep.subr.mxu0 0.0
        %446 = vmatpush1.msra.mxu0 %v325
        %447 = vmatprep.subr.mxu0 0.0
        %448 = vmatpush1.msra.mxu0 %v326
        %449 = vmatprep.subr.mxu0 0.0
        %450 = vmatpush1.msra.mxu0 %v327
        %451 = vmatprep.subr.mxu0 0.0
        %452 = vmatpush1.msra.mxu0 %v328
        %453 = vmatprep.subr.mxu0 0.0
        %454 = vmatpush1.msra.mxu0 %v329
        %455 = vmatprep.subr.mxu0 0.0
        %456 = vmatpush1.msra.mxu0 %v330
        %457 = vmatprep.subr.mxu0 0.0
        %458 = vmatpush1.msra.mxu0 %v331
        %459 = vmatprep.subr.mxu0 0.0
        %460 = vmatpush1.msra.mxu0 0.0
        %461 = vmatprep.subr.mxu0 0.0
        %462 = vmatpush1.msra.mxu0 0.0
        %463 = vmatprep.subr.mxu0 0.0
        %464 = vmatpush1.msra.mxu0 0.0
        %465 = vmatprep.subr.mxu0 0.0
        %466 = vmatpush1.msra.mxu0 0.0
        %467 = vmatprep.subr.mxu0 0.0
        %468 = vmatpush1.msra.mxu0 0.0
        %469 = vmatprep.subr.mxu0 0.0
        %470 = vmatpush1.msra.mxu0 0.0
        %471 = vmatprep.subr.mxu0 0.0
        %472 = vmatpush1.msra.mxu0 0.0
        %473 = vmatprep.subr.mxu0 0.0
        %474 = vmatpush1.msra.mxu0 0.0
        %475 = vmatprep.subr.mxu0 0.0
        %476 = vmatpush1.msra.mxu0 0.0
        %477 = vmatprep.subr.mxu0 0.0
        %478 = vmatpush1.msra.mxu0 0.0
        %479 = vmatprep.subr.mxu0 0.0
        %480 = vmatpush1.msra.mxu0 0.0
        %481 = vmatprep.subr.mxu0 0.0
        %482 = vmatpush1.msra.mxu0 0.0
        %483 = vmatprep.subr.mxu0 0.0
        %484 = vmatpush1.msra.mxu0 0.0
        %485 = vmatprep.subr.mxu0 0.0
        %486 = vmatpush1.msra.mxu0 0.0
        %487 = vmatprep.subr.mxu0 0.0
        %488 = vmatpush1.msra.mxu0 0.0
        %489 = vmatprep.subr.mxu0 0.0
        %490 = vmatpush1.msra.mxu0 0.0
        %491 = vmatprep.subr.mxu0 0.0
        %492 = vmatpush1.msra.mxu0 0.0
        %493 = vmatprep.subr.mxu0 0.0
        %494 = vmatpush1.msra.mxu0 0.0
        %495 = vmatprep.subr.mxu0 0.0
        %496 = vmatpush1.msra.mxu0 0.0
        %497 = vmatprep.subr.mxu0 0.0
        %498 = vmatpush1.msra.mxu0 0.0
        %499 = vmatprep.subr.mxu0 0.0
        %500 = vmatpush1.msra.mxu0 0.0
        %501 = vmatprep.subr.mxu0 0.0
        %502 = vmatpush1.msra.mxu0 0.0
        %503 = vmatprep.subr.mxu0 0.0
        %504 = vmatpush1.msra.mxu0 0.0
        %505 = vmatprep.subr.mxu0 0.0
        %506 = vmatpush1.msra.mxu0 0.0
        %507 = vmatprep.mubr.f32.mxu0 0.0
        %508 = vmatmul.mubr.f32.gmra.mrb[0].mxu0 %v437
        %v509 = vpop.f32.mrb[0].mxu0
        %v510 = vadd.f32 %v424, %v509
        %v511 = vpop.f32.mrb[0].mxu0
        %512 = vmatprep.mubr.f32.mxu0 0.0
        %513 = vmatmul.mubr.f32.gmra.mrb[0].mxu0 %v439
        %v514 = vpop.f32.mrb[0].mxu0
        %v515 = vadd.f32 %v429, %v514
        %v516 = vpop.f32.mrb[0].mxu0
        %517 = vmatprep.mubr.f32.mxu0 0.0
        %518 = vmatmul.mubr.f32.gmra.mrb[0].mxu0 %v441
        %v519 = vpop.f32.mrb[0].mxu0
        %v520 = vadd.f32 %v434, %v519
        %v521 = vpop.f32.mrb[0].mxu0
        %522 = vdwg.mxu0
        %s523 = scalar_lea.vmem %s1, 128
        %v524 = vld [vmem:[%s523] sm:$0xff]
        %v525 = vld [vmem:[%s523 + $0x8] sm:$0xff]
        %v526 = vld [vmem:[%s523 + $0x10] sm:$0xff]
        %v527 = vld [vmem:[%s523 + $0x18] sm:$0xff]
        %v528 = vld [vmem:[%s523 + $0x20] sm:$0xff]
        %v529 = vld [vmem:[%s523 + $0x28] sm:$0xff]
        %v530 = vld [vmem:[%s523 + $0x30] sm:$0xff]
        %v531 = vld [vmem:[%s523 + $0x38] sm:$0xff]
        %vm532 = vcmask 1045504
        %v533 = vrot.slane %v321, 2
        %v534 = vrot.slane %v322, 2
        %v535 = vsel %vm532, %v533, %v534
        %v536 = vrot.slane %v323, 2
        %v537 = vsel %vm532, %v534, %v536
        %v538 = vsel %vm350, %v535, 0
        %v540 = vsel %vm350, %v537, 0
        %v542 = vsel %vm350, %v536, 0
        %544 = vmatprep.subr.mxu0 0.0
        %545 = vmatpush1.msra.mxu0 %v524
        %546 = vmatprep.subr.mxu0 0.0
        %547 = vmatpush1.msra.mxu0 %v525
        %548 = vmatprep.subr.mxu0 0.0
        %549 = vmatpush1.msra.mxu0 %v526
        %550 = vmatprep.subr.mxu0 0.0
        %551 = vmatpush1.msra.mxu0 %v527
        %552 = vmatprep.subr.mxu0 0.0
        %553 = vmatpush1.msra.mxu0 %v528
        %554 = vmatprep.subr.mxu0 0.0
        %555 = vmatpush1.msra.mxu0 %v529
        %556 = vmatprep.subr.mxu0 0.0
        %557 = vmatpush1.msra.mxu0 %v530
        %558 = vmatprep.subr.mxu0 0.0
        %559 = vmatpush1.msra.mxu0 %v531
        %560 = vmatprep.subr.mxu0 0.0
        %561 = vmatpush1.msra.mxu0 0.0
        %562 = vmatprep.subr.mxu0 0.0
        %563 = vmatpush1.msra.mxu0 0.0
        %564 = vmatprep.subr.mxu0 0.0
        %565 = vmatpush1.msra.mxu0 0.0
        %566 = vmatprep.subr.mxu0 0.0
        %567 = vmatpush1.msra.mxu0 0.0
        %568 = vmatprep.subr.mxu0 0.0
        %569 = vmatpush1.msra.mxu0 0.0
        %570 = vmatprep.subr.mxu0 0.0
        %571 = vmatpush1.msra.mxu0 0.0
        %572 = vmatprep.subr.mxu0 0.0
        %573 = vmatpush1.msra.mxu0 0.0
        %574 = vmatprep.subr.mxu0 0.0
        %575 = vmatpush1.msra.mxu0 0.0
        %576 = vmatprep.subr.mxu0 0.0
        %577 = vmatpush1.msra.mxu0 0.0
        %578 = vmatprep.subr.mxu0 0.0
        %579 = vmatpush1.msra.mxu0 0.0
        %580 = vmatprep.subr.mxu0 0.0
        %581 = vmatpush1.msra.mxu0 0.0
        %582 = vmatprep.subr.mxu0 0.0
        %583 = vmatpush1.msra.mxu0 0.0
        %584 = vmatprep.subr.mxu0 0.0
        %585 = vmatpush1.msra.mxu0 0.0
        %586 = vmatprep.subr.mxu0 0.0
        %587 = vmatpush1.msra.mxu0 0.0
        %588 = vmatprep.subr.mxu0 0.0
        %589 = vmatpush1.msra.mxu0 0.0
        %590 = vmatprep.subr.mxu0 0.0
        %591 = vmatpush1.msra.mxu0 0.0
        %592 = vmatprep.subr.mxu0 0.0
        %593 = vmatpush1.msra.mxu0 0.0
        %594 = vmatprep.subr.mxu0 0.0
        %595 = vmatpush1.msra.mxu0 0.0
        %596 = vmatprep.subr.mxu0 0.0
        %597 = vmatpush1.msra.mxu0 0.0
        %598 = vmatprep.subr.mxu0 0.0
        %599 = vmatpush1.msra.mxu0 0.0
        %600 = vmatprep.subr.mxu0 0.0
        %601 = vmatpush1.msra.mxu0 0.0
        %602 = vmatprep.subr.mxu0 0.0
        %603 = vmatpush1.msra.mxu0 0.0
        %604 = vmatprep.subr.mxu0 0.0
        %605 = vmatpush1.msra.mxu0 0.0
        %606 = vmatprep.subr.mxu0 0.0
        %607 = vmatpush1.msra.mxu0 0.0
        %608 = vmatprep.mubr.f32.mxu0 0.0
        %609 = vmatmul.mubr.f32.gmra.mrb[0].mxu0 %v538
        %v610 = vpop.f32.mrb[0].mxu0
        %v611 = vadd.f32 0.0, %v610
        %v612 = vpop.f32.mrb[0].mxu0
        %613 = vmatprep.mubr.f32.mxu0 0.0
        %614 = vmatmul.mubr.f32.gmra.mrb[0].mxu0 %v540
        %v615 = vpop.f32.mrb[0].mxu0
        %v616 = vadd.f32 0.0, %v615
        %v617 = vpop.f32.mrb[0].mxu0
        %618 = vmatprep.mubr.f32.mxu0 0.0
        %619 = vmatmul.mubr.f32.gmra.mrb[0].mxu0 %v542
        %v620 = vpop.f32.mrb[0].mxu0
        %v621 = vadd.f32 0.0, %v620
        %v622 = vpop.f32.mrb[0].mxu0
        %623 = vdwg.mxu0
        %v624 = vadd.f32 %v510, %v611
        %v625 = vadd.f32 %v515, %v616
        %v626 = vadd.f32 %v520, %v621
        %v627 = vld [vmem:[%s2] sm:$0x1]
        %v629 = vlaneseq
        %v630 = vshrl.u32 %v629, 7
        %v631 = vsub.s32 0, %v630
        %v632 = vrot.slane %v627, %v631
        %v634 = vadd.f32 %v624, %v632
        %v635 = vadd.f32 %v625, %v632
        %v636 = vadd.f32 %v626, %v632
        %v637 = vmax.f32 %v634, 0.0
        %v638 = vmax.f32 %v635, 0.0
        %v639 = vmax.f32 %v636, 0.0
        %v640 = vlaneseq
        %v641 = vshrl.u32 %v640, 7
        %v642 = vadd.s32 %v641, 8
        %v643 = vadd.s32 %v641, 16
        %s644 = ssub.s32 %s319, 2
        %v645 = vstv %s644
        %v646 = vadd.s32 %v641, %v645
        %v647 = vadd.s32 %v642, %v645
        %v648 = vadd.s32 %v643, %v645
        %vm649 = vcmp.ge.s32.totalorder %v646, 0
        %vm650 = vcmp.ge.s32.totalorder %v647, 0
        %vm651 = vcmp.ge.s32.totalorder %v648, 0
        %vm652 = vcmp.lt.s32.totalorder %v646, 16
        %vm653 = vcmp.lt.s32.totalorder %v647, 16
        %vm654 = vcmp.lt.s32.totalorder %v648, 16
        %vm655 = vmand %vm649, %vm652
        %vm656 = vmand %vm650, %vm653
        %vm657 = vmand %vm651, %vm654
        %v658 = vsel %vm655, %v637, 0.0
        %v659 = vsel %vm656, %v638, 0.0
        %v660 = vsel %vm657, %v639, 0.0
        %v661 = vld [vmem:[#allocation2] sm:$0xff]
        %v662 = vld [vmem:[#allocation2 + $0x8] sm:$0xff]
        %v663 = vld [vmem:[#allocation2 + $0x10] sm:$0xff]
        %v664 = vld [vmem:[#allocation2 + $0x18] sm:$0xff]
        %v665 = vld [vmem:[#allocation2 + $0x20] sm:$0xff]
        %v666 = vld [vmem:[#allocation2 + $0x28] sm:$0xff]
        %v667 = vld [vmem:[#allocation2 + $0x30] sm:$0xff]
        %v668 = vld [vmem:[#allocation2 + $0x38] sm:$0xff]
        %s669 = scalar_lea.vmem [#allocation2], 64
        %v670 = vld [vmem:[%s669] sm:$0xff]
        %v671 = vld [vmem:[%s669 + $0x8] sm:$0xff]
        %v672 = vld [vmem:[%s669 + $0x10] sm:$0xff]
        %v673 = vld [vmem:[%s669 + $0x18] sm:$0xff]
        %v674 = vld [vmem:[%s669 + $0x20] sm:$0xff]
        %v675 = vld [vmem:[%s669 + $0x28] sm:$0xff]
        %v676 = vld [vmem:[%s669 + $0x30] sm:$0xff]
        %v677 = vld [vmem:[%s669 + $0x38] sm:$0xff]
        %v681 = vrot.slane %v658, 1
        %v682 = vrot.slane %v659, 1
        %v683 = vsel %vm344, %v681, %v682
        %v684 = vrot.slane %v660, 1
        %v685 = vsel %vm344, %v682, %v684
        %v686 = vsel %vm350, %v683, 0
        %v688 = vsel %vm350, %v685, 0
        %v690 = vsel %vm350, %v684, 0
        %692 = vmatprep.subr.mxu0 0.0
        %693 = vmatpush1.msra.mxu0 %v670
        %694 = vmatprep.subr.mxu0 0.0
        %695 = vmatpush1.msra.mxu0 %v671
        %696 = vmatprep.subr.mxu0 0.0
        %697 = vmatpush1.msra.mxu0 %v672
        %698 = vmatprep.subr.mxu0 0.0
        %699 = vmatpush1.msra.mxu0 %v673
        %700 = vmatprep.subr.mxu0 0.0
        %701 = vmatpush1.msra.mxu0 %v674
        %702 = vmatprep.subr.mxu0 0.0
        %703 = vmatpush1.msra.mxu0 %v675
        %704 = vmatprep.subr.mxu0 0.0
        %705 = vmatpush1.msra.mxu0 %v676
        %706 = vmatprep.subr.mxu0 0.0
        %707 = vmatpush1.msra.mxu0 %v677
        %708 = vmatprep.subr.mxu0 0.0
        %709 = vmatpush1.msra.mxu0 0.0
        %710 = vmatprep.subr.mxu0 0.0
        %711 = vmatpush1.msra.mxu0 0.0
        %712 = vmatprep.subr.mxu0 0.0
        %713 = vmatpush1.msra.mxu0 0.0
        %714 = vmatprep.subr.mxu0 0.0
        %715 = vmatpush1.msra.mxu0 0.0
        %716 = vmatprep.subr.mxu0 0.0
        %717 = vmatpush1.msra.mxu0 0.0
        %718 = vmatprep.subr.mxu0 0.0
        %719 = vmatpush1.msra.mxu0 0.0
        %720 = vmatprep.subr.mxu0 0.0
        %721 = vmatpush1.msra.mxu0 0.0
        %722 = vmatprep.subr.mxu0 0.0
        %723 = vmatpush1.msra.mxu0 0.0
        %724 = vmatprep.subr.mxu0 0.0
        %725 = vmatpush1.msra.mxu0 0.0
        %726 = vmatprep.subr.mxu0 0.0
        %727 = vmatpush1.msra.mxu0 0.0
        %728 = vmatprep.subr.mxu0 0.0
        %729 = vmatpush1.msra.mxu0 0.0
        %730 = vmatprep.subr.mxu0 0.0
        %731 = vmatpush1.msra.mxu0 0.0
        %732 = vmatprep.subr.mxu0 0.0
        %733 = vmatpush1.msra.mxu0 0.0
        %734 = vmatprep.subr.mxu0 0.0
        %735 = vmatpush1.msra.mxu0 0.0
        %736 = vmatprep.subr.mxu0 0.0
        %737 = vmatpush1.msra.mxu0 0.0
        %738 = vmatprep.subr.mxu0 0.0
        %739 = vmatpush1.msra.mxu0 0.0
        %740 = vmatprep.subr.mxu0 0.0
        %741 = vmatpush1.msra.mxu0 0.0
        %742 = vmatprep.subr.mxu0 0.0
        %743 = vmatpush1.msra.mxu0 0.0
        %744 = vmatprep.subr.mxu0 0.0
        %745 = vmatpush1.msra.mxu0 0.0
        %746 = vmatprep.subr.mxu0 0.0
        %747 = vmatpush1.msra.mxu0 0.0
        %748 = vmatprep.subr.mxu0 0.0
        %749 = vmatpush1.msra.mxu0 0.0
        %750 = vmatprep.subr.mxu0 0.0
        %751 = vmatpush1.msra.mxu0 0.0
        %752 = vmatprep.subr.mxu0 0.0
        %753 = vmatpush1.msra.mxu0 0.0
        %754 = vmatprep.subr.mxu0 0.0
        %755 = vmatpush1.msra.mxu0 0.0
        %756 = vmatprep.mubr.f32.mxu0 0.0
        %757 = vmatmul.mubr.f32.gmra.mrb[0].mxu0 %v686
        %v758 = vpop.f32.mrb[0].mxu0
        %v759 = vadd.f32 0.0, %v758
        %v760 = vpop.f32.mrb[0].mxu0
        %761 = vmatprep.mubr.f32.mxu0 0.0
        %762 = vmatmul.mubr.f32.gmra.mrb[0].mxu0 %v688
        %v763 = vpop.f32.mrb[0].mxu0
        %v764 = vadd.f32 0.0, %v763
        %v765 = vpop.f32.mrb[0].mxu0
        %766 = vmatprep.mubr.f32.mxu0 0.0
        %767 = vmatmul.mubr.f32.gmra.mrb[0].mxu0 %v690
        %v768 = vpop.f32.mrb[0].mxu0
        %v769 = vadd.f32 0.0, %v768
        %v770 = vpop.f32.mrb[0].mxu0
        %771 = vdwg.mxu0
        %v772 = vsel %vm350, %v658, 0
        %v774 = vsel %vm350, %v659, 0
        %v776 = vsel %vm350, %v660, 0
        %778 = vmatprep.subr.mxu0 0.0
        %779 = vmatpush1.msra.mxu0 %v661
        %780 = vmatprep.subr.mxu0 0.0
        %781 = vmatpush1.msra.mxu0 %v662
        %782 = vmatprep.subr.mxu0 0.0
        %783 = vmatpush1.msra.mxu0 %v663
        %784 = vmatprep.subr.mxu0 0.0
        %785 = vmatpush1.msra.mxu0 %v664
        %786 = vmatprep.subr.mxu0 0.0
        %787 = vmatpush1.msra.mxu0 %v665
        %788 = vmatprep.subr.mxu0 0.0
        %789 = vmatpush1.msra.mxu0 %v666
        %790 = vmatprep.subr.mxu0 0.0
        %791 = vmatpush1.msra.mxu0 %v667
        %792 = vmatprep.subr.mxu0 0.0
        %793 = vmatpush1.msra.mxu0 %v668
        %794 = vmatprep.subr.mxu0 0.0
        %795 = vmatpush1.msra.mxu0 0.0
        %796 = vmatprep.subr.mxu0 0.0
        %797 = vmatpush1.msra.mxu0 0.0
        %798 = vmatprep.subr.mxu0 0.0
        %799 = vmatpush1.msra.mxu0 0.0
        %800 = vmatprep.subr.mxu0 0.0
        %801 = vmatpush1.msra.mxu0 0.0
        %802 = vmatprep.subr.mxu0 0.0
        %803 = vmatpush1.msra.mxu0 0.0
        %804 = vmatprep.subr.mxu0 0.0
        %805 = vmatpush1.msra.mxu0 0.0
        %806 = vmatprep.subr.mxu0 0.0
        %807 = vmatpush1.msra.mxu0 0.0
        %808 = vmatprep.subr.mxu0 0.0
        %809 = vmatpush1.msra.mxu0 0.0
        %810 = vmatprep.subr.mxu0 0.0
        %811 = vmatpush1.msra.mxu0 0.0
        %812 = vmatprep.subr.mxu0 0.0
        %813 = vmatpush1.msra.mxu0 0.0
        %814 = vmatprep.subr.mxu0 0.0
        %815 = vmatpush1.msra.mxu0 0.0
        %816 = vmatprep.subr.mxu0 0.0
        %817 = vmatpush1.msra.mxu0 0.0
        %818 = vmatprep.subr.mxu0 0.0
        %819 = vmatpush1.msra.mxu0 0.0
        %820 = vmatprep.subr.mxu0 0.0
        %821 = vmatpush1.msra.mxu0 0.0
        %822 = vmatprep.subr.mxu0 0.0
        %823 = vmatpush1.msra.mxu0 0.0
        %824 = vmatprep.subr.mxu0 0.0
        %825 = vmatpush1.msra.mxu0 0.0
        %826 = vmatprep.subr.mxu0 0.0
        %827 = vmatpush1.msra.mxu0 0.0
        %828 = vmatprep.subr.mxu0 0.0
        %829 = vmatpush1.msra.mxu0 0.0
        %830 = vmatprep.subr.mxu0 0.0
        %831 = vmatpush1.msra.mxu0 0.0
        %832 = vmatprep.subr.mxu0 0.0
        %833 = vmatpush1.msra.mxu0 0.0
        %834 = vmatprep.subr.mxu0 0.0
        %835 = vmatpush1.msra.mxu0 0.0
        %836 = vmatprep.subr.mxu0 0.0
        %837 = vmatpush1.msra.mxu0 0.0
        %838 = vmatprep.subr.mxu0 0.0
        %839 = vmatpush1.msra.mxu0 0.0
        %840 = vmatprep.subr.mxu0 0.0
        %841 = vmatpush1.msra.mxu0 0.0
        %842 = vmatprep.mubr.f32.mxu0 0.0
        %843 = vmatmul.mubr.f32.gmra.mrb[0].mxu0 %v772
        %v844 = vpop.f32.mrb[0].mxu0
        %v845 = vadd.f32 %v759, %v844
        %v846 = vpop.f32.mrb[0].mxu0
        %847 = vmatprep.mubr.f32.mxu0 0.0
        %848 = vmatmul.mubr.f32.gmra.mrb[0].mxu0 %v774
        %v849 = vpop.f32.mrb[0].mxu0
        %v850 = vadd.f32 %v764, %v849
        %v851 = vpop.f32.mrb[0].mxu0
        %852 = vmatprep.mubr.f32.mxu0 0.0
        %853 = vmatmul.mubr.f32.gmra.mrb[0].mxu0 %v776
        %v854 = vpop.f32.mrb[0].mxu0
        %v855 = vadd.f32 %v769, %v854
        %v856 = vpop.f32.mrb[0].mxu0
        %857 = vdwg.mxu0
        %s858 = scalar_lea.vmem [#allocation2], 128
        %v859 = vld [vmem:[%s858] sm:$0xff]
        %v860 = vld [vmem:[%s858 + $0x8] sm:$0xff]
        %v861 = vld [vmem:[%s858 + $0x10] sm:$0xff]
        %v862 = vld [vmem:[%s858 + $0x18] sm:$0xff]
        %v863 = vld [vmem:[%s858 + $0x20] sm:$0xff]
        %v864 = vld [vmem:[%s858 + $0x28] sm:$0xff]
        %v865 = vld [vmem:[%s858 + $0x30] sm:$0xff]
        %v866 = vld [vmem:[%s858 + $0x38] sm:$0xff]
        %v867 = vrot.slane %v658, 2
        %v868 = vrot.slane %v659, 2
        %v869 = vsel %vm532, %v867, %v868
        %v870 = vrot.slane %v660, 2
        %v871 = vsel %vm532, %v868, %v870
        %v872 = vsel %vm350, %v869, 0
        %v874 = vsel %vm350, %v871, 0
        %v876 = vsel %vm350, %v870, 0
        %878 = vmatprep.subr.mxu0 0.0
        %879 = vmatpush1.msra.mxu0 %v859
        %880 = vmatprep.subr.mxu0 0.0
        %881 = vmatpush1.msra.mxu0 %v860
        %882 = vmatprep.subr.mxu0 0.0
        %883 = vmatpush1.msra.mxu0 %v861
        %884 = vmatprep.subr.mxu0 0.0
        %885 = vmatpush1.msra.mxu0 %v862
        %886 = vmatprep.subr.mxu0 0.0
        %887 = vmatpush1.msra.mxu0 %v863
        %888 = vmatprep.subr.mxu0 0.0
        %889 = vmatpush1.msra.mxu0 %v864
        %890 = vmatprep.subr.mxu0 0.0
        %891 = vmatpush1.msra.mxu0 %v865
        %892 = vmatprep.subr.mxu0 0.0
        %893 = vmatpush1.msra.mxu0 %v866
        %894 = vmatprep.subr.mxu0 0.0
        %895 = vmatpush1.msra.mxu0 0.0
        %896 = vmatprep.subr.mxu0 0.0
        %897 = vmatpush1.msra.mxu0 0.0
        %898 = vmatprep.subr.mxu0 0.0
        %899 = vmatpush1.msra.mxu0 0.0
        %900 = vmatprep.subr.mxu0 0.0
        %901 = vmatpush1.msra.mxu0 0.0
        %902 = vmatprep.subr.mxu0 0.0
        %903 = vmatpush1.msra.mxu0 0.0
        %904 = vmatprep.subr.mxu0 0.0
        %905 = vmatpush1.msra.mxu0 0.0
        %906 = vmatprep.subr.mxu0 0.0
        %907 = vmatpush1.msra.mxu0 0.0
        %908 = vmatprep.subr.mxu0 0.0
        %909 = vmatpush1.msra.mxu0 0.0
        %910 = vmatprep.subr.mxu0 0.0
        %911 = vmatpush1.msra.mxu0 0.0
        %912 = vmatprep.subr.mxu0 0.0
        %913 = vmatpush1.msra.mxu0 0.0
        %914 = vmatprep.subr.mxu0 0.0
        %915 = vmatpush1.msra.mxu0 0.0
        %916 = vmatprep.subr.mxu0 0.0
        %917 = vmatpush1.msra.mxu0 0.0
        %918 = vmatprep.subr.mxu0 0.0
        %919 = vmatpush1.msra.mxu0 0.0
        %920 = vmatprep.subr.mxu0 0.0
        %921 = vmatpush1.msra.mxu0 0.0
        %922 = vmatprep.subr.mxu0 0.0
        %923 = vmatpush1.msra.mxu0 0.0
        %924 = vmatprep.subr.mxu0 0.0
        %925 = vmatpush1.msra.mxu0 0.0
        %926 = vmatprep.subr.mxu0 0.0
        %927 = vmatpush1.msra.mxu0 0.0
        %928 = vmatprep.subr.mxu0 0.0
        %929 = vmatpush1.msra.mxu0 0.0
        %930 = vmatprep.subr.mxu0 0.0
        %931 = vmatpush1.msra.mxu0 0.0
        %932 = vmatprep.subr.mxu0 0.0
        %933 = vmatpush1.msra.mxu0 0.0
        %934 = vmatprep.subr.mxu0 0.0
        %935 = vmatpush1.msra.mxu0 0.0
        %936 = vmatprep.subr.mxu0 0.0
        %937 = vmatpush1.msra.mxu0 0.0
        %938 = vmatprep.subr.mxu0 0.0
        %939 = vmatpush1.msra.mxu0 0.0
        %940 = vmatprep.subr.mxu0 0.0
        %941 = vmatpush1.msra.mxu0 0.0
        %942 = vmatprep.mubr.f32.mxu0 0.0
        %943 = vmatmul.mubr.f32.gmra.mrb[0].mxu0 %v872
        %v944 = vpop.f32.mrb[0].mxu0
        %v945 = vadd.f32 0.0, %v944
        %v946 = vpop.f32.mrb[0].mxu0
        %947 = vmatprep.mubr.f32.mxu0 0.0
        %948 = vmatmul.mubr.f32.gmra.mrb[0].mxu0 %v874
        %v949 = vpop.f32.mrb[0].mxu0
        %v950 = vadd.f32 0.0, %v949
        %v951 = vpop.f32.mrb[0].mxu0
        %952 = vmatprep.mubr.f32.mxu0 0.0
        %953 = vmatmul.mubr.f32.gmra.mrb[0].mxu0 %v876
        %v954 = vpop.f32.mrb[0].mxu0
        %v955 = vadd.f32 0.0, %v954
        %v956 = vpop.f32.mrb[0].mxu0
        %957 = vdwg.mxu0
        %v958 = vadd.f32 %v845, %v945
        %v959 = vadd.f32 %v850, %v950
        %v960 = vadd.f32 %v855, %v955
        %v961 = vld [vmem:[%s4] sm:$0x1]
        %v963 = vlaneseq
        %v964 = vshrl.u32 %v963, 7
        %v965 = vsub.s32 0, %v964
        %v966 = vrot.slane %v961, %v965
        %v968 = vadd.f32 %v958, %v966
        %v969 = vadd.f32 %v959, %v966
        %v970 = vadd.f32 %v960, %v966
        %v974 = vadd.f32 %v968, %v535
        %v975 = vadd.f32 %v969, %v537
        %v976 = vadd.f32 %v970, %v536
        %s977 = ssub.s32 %s319, 1
        %v978 = vstv %s977
        %v979 = vadd.s32 %v641, %v978
        %v980 = vadd.s32 %v642, %v978
        %v981 = vadd.s32 %v643, %v978
        %vm982 = vcmp.ge.s32.totalorder %v979, 0
        %vm983 = vcmp.ge.s32.totalorder %v980, 0
        %vm984 = vcmp.ge.s32.totalorder %v981, 0
        %vm985 = vcmp.lt.s32.totalorder %v979, 16
        %vm986 = vcmp.lt.s32.totalorder %v980, 16
        %vm987 = vcmp.lt.s32.totalorder %v981, 16
        %vm988 = vmand %vm982, %vm985
        %vm989 = vmand %vm983, %vm986
        %vm990 = vmand %vm984, %vm987
        %v991 = vsel %vm988, %v974, 0.0
        %v992 = vsel %vm989, %v975, 0.0
        %v993 = vsel %vm990, %v976, 0.0
        %v994 = vld [vmem:[%s5] sm:$0xff]
        %v995 = vld [vmem:[%s5 + $0x8] sm:$0xff]
        %v996 = vld [vmem:[%s5 + $0x10] sm:$0xff]
        %v997 = vld [vmem:[%s5 + $0x18] sm:$0xff]
        %v998 = vld [vmem:[%s5 + $0x20] sm:$0xff]
        %v999 = vld [vmem:[%s5 + $0x28] sm:$0xff]
        %v1000 = vld [vmem:[%s5 + $0x30] sm:$0xff]
        %v1001 = vld [vmem:[%s5 + $0x38] sm:$0xff]
        %s1002 = scalar_lea.vmem %s5, 64
        %v1003 = vld [vmem:[%s1002] sm:$0xff]
        %v1004 = vld [vmem:[%s1002 + $0x8] sm:$0xff]
        %v1005 = vld [vmem:[%s1002 + $0x10] sm:$0xff]
        %v1006 = vld [vmem:[%s1002 + $0x18] sm:$0xff]
        %v1007 = vld [vmem:[%s1002 + $0x20] sm:$0xff]
        %v1008 = vld [vmem:[%s1002 + $0x28] sm:$0xff]
        %v1009 = vld [vmem:[%s1002 + $0x30] sm:$0xff]
        %v1010 = vld [vmem:[%s1002 + $0x38] sm:$0xff]
        %v1014 = vrot.slane %v991, 1
        %v1015 = vrot.slane %v992, 1
        %v1016 = vsel %vm344, %v1014, %v1015
        %v1017 = vrot.slane %v993, 1
        %v1018 = vsel %vm344, %v1015, %v1017
        %v1019 = vsel %vm350, %v1016, 0
        %v1021 = vsel %vm350, %v1018, 0
        %1023 = vmatprep.subr.mxu0 0.0
        %1024 = vmatpush1.msra.mxu0 %v1003
        %1025 = vmatprep.subr.mxu0 0.0
        %1026 = vmatpush1.msra.mxu0 %v1004
        %1027 = vmatprep.subr.mxu0 0.0
        %1028 = vmatpush1.msra.mxu0 %v1005
        %1029 = vmatprep.subr.mxu0 0.0
        %1030 = vmatpush1.msra.mxu0 %v1006
        %1031 = vmatprep.subr.mxu0 0.0
        %1032 = vmatpush1.msra.mxu0 %v1007
        %1033 = vmatprep.subr.mxu0 0.0
        %1034 = vmatpush1.msra.mxu0 %v1008
        %1035 = vmatprep.subr.mxu0 0.0
        %1036 = vmatpush1.msra.mxu0 %v1009
        %1037 = vmatprep.subr.mxu0 0.0
        %1038 = vmatpush1.msra.mxu0 %v1010
        %1039 = vmatprep.subr.mxu0 0.0
        %1040 = vmatpush1.msra.mxu0 0.0
        %1041 = vmatprep.subr.mxu0 0.0
        %1042 = vmatpush1.msra.mxu0 0.0
        %1043 = vmatprep.subr.mxu0 0.0
        %1044 = vmatpush1.msra.mxu0 0.0
        %1045 = vmatprep.subr.mxu0 0.0
        %1046 = vmatpush1.msra.mxu0 0.0
        %1047 = vmatprep.subr.mxu0 0.0
        %1048 = vmatpush1.msra.mxu0 0.0
        %1049 = vmatprep.subr.mxu0 0.0
        %1050 = vmatpush1.msra.mxu0 0.0
        %1051 = vmatprep.subr.mxu0 0.0
        %1052 = vmatpush1.msra.mxu0 0.0
        %1053 = vmatprep.subr.mxu0 0.0
        %1054 = vmatpush1.msra.mxu0 0.0
        %1055 = vmatprep.subr.mxu0 0.0
        %1056 = vmatpush1.msra.mxu0 0.0
        %1057 = vmatprep.subr.mxu0 0.0
        %1058 = vmatpush1.msra.mxu0 0.0
        %1059 = vmatprep.subr.mxu0 0.0
        %1060 = vmatpush1.msra.mxu0 0.0
        %1061 = vmatprep.subr.mxu0 0.0
        %1062 = vmatpush1.msra.mxu0 0.0
        %1063 = vmatprep.subr.mxu0 0.0
        %1064 = vmatpush1.msra.mxu0 0.0
        %1065 = vmatprep.subr.mxu0 0.0
        %1066 = vmatpush1.msra.mxu0 0.0
        %1067 = vmatprep.subr.mxu0 0.0
        %1068 = vmatpush1.msra.mxu0 0.0
        %1069 = vmatprep.subr.mxu0 0.0
        %1070 = vmatpush1.msra.mxu0 0.0
        %1071 = vmatprep.subr.mxu0 0.0
        %1072 = vmatpush1.msra.mxu0 0.0
        %1073 = vmatprep.subr.mxu0 0.0
        %1074 = vmatpush1.msra.mxu0 0.0
        %1075 = vmatprep.subr.mxu0 0.0
        %1076 = vmatpush1.msra.mxu0 0.0
        %1077 = vmatprep.subr.mxu0 0.0
        %1078 = vmatpush1.msra.mxu0 0.0
        %1079 = vmatprep.subr.mxu0 0.0
        %1080 = vmatpush1.msra.mxu0 0.0
        %1081 = vmatprep.subr.mxu0 0.0
        %1082 = vmatpush1.msra.mxu0 0.0
        %1083 = vmatprep.subr.mxu0 0.0
        %1084 = vmatpush1.msra.mxu0 0.0
        %1085 = vmatprep.subr.mxu0 0.0
        %1086 = vmatpush1.msra.mxu0 0.0
        %1087 = vmatprep.mubr.f32.mxu0 0.0
        %1088 = vmatmul.mubr.f32.gmra.mrb[0].mxu0 %v1019
        %v1089 = vpop.f32.mrb[0].mxu0
        %v1090 = vadd.f32 0.0, %v1089
        %v1091 = vpop.f32.mrb[0].mxu0
        %1092 = vmatprep.mubr.f32.mxu0 0.0
        %1093 = vmatmul.mubr.f32.gmra.mrb[0].mxu0 %v1021
        %v1094 = vpop.f32.mrb[0].mxu0
        %v1095 = vadd.f32 0.0, %v1094
        %v1096 = vpop.f32.mrb[0].mxu0
        %1097 = vdwg.mxu0
        %v1098 = vsel %vm350, %v991, 0
        %v1100 = vsel %vm350, %v992, 0
        %1102 = vmatprep.subr.mxu0 0.0
        %1103 = vmatpush1.msra.mxu0 %v994
        %1104 = vmatprep.subr.mxu0 0.0
        %1105 = vmatpush1.msra.mxu0 %v995
        %1106 = vmatprep.subr.mxu0 0.0
        %1107 = vmatpush1.msra.mxu0 %v996
        %1108 = vmatprep.subr.mxu0 0.0
        %1109 = vmatpush1.msra.mxu0 %v997
        %1110 = vmatprep.subr.mxu0 0.0
        %1111 = vmatpush1.msra.mxu0 %v998
        %1112 = vmatprep.subr.mxu0 0.0
        %1113 = vmatpush1.msra.mxu0 %v999
        %1114 = vmatprep.subr.mxu0 0.0
        %1115 = vmatpush1.msra.mxu0 %v1000
        %1116 = vmatprep.subr.mxu0 0.0
        %1117 = vmatpush1.msra.mxu0 %v1001
        %1118 = vmatprep.subr.mxu0 0.0
        %1119 = vmatpush1.msra.mxu0 0.0
        %1120 = vmatprep.subr.mxu0 0.0
        %1121 = vmatpush1.msra.mxu0 0.0
        %1122 = vmatprep.subr.mxu0 0.0
        %1123 = vmatpush1.msra.mxu0 0.0
        %1124 = vmatprep.subr.mxu0 0.0
        %1125 = vmatpush1.msra.mxu0 0.0
        %1126 = vmatprep.subr.mxu0 0.0
        %1127 = vmatpush1.msra.mxu0 0.0
        %1128 = vmatprep.subr.mxu0 0.0
        %1129 = vmatpush1.msra.mxu0 0.0
        %1130 = vmatprep.subr.mxu0 0.0
        %1131 = vmatpush1.msra.mxu0 0.0
        %1132 = vmatprep.subr.mxu0 0.0
        %1133 = vmatpush1.msra.mxu0 0.0
        %1134 = vmatprep.subr.mxu0 0.0
        %1135 = vmatpush1.msra.mxu0 0.0
        %1136 = vmatprep.subr.mxu0 0.0
        %1137 = vmatpush1.msra.mxu0 0.0
        %1138 = vmatprep.subr.mxu0 0.0
        %1139 = vmatpush1.msra.mxu0 0.0
        %1140 = vmatprep.subr.mxu0 0.0
        %1141 = vmatpush1.msra.mxu0 0.0
        %1142 = vmatprep.subr.mxu0 0.0
        %1143 = vmatpush1.msra.mxu0 0.0
        %1144 = vmatprep.subr.mxu0 0.0
        %1145 = vmatpush1.msra.mxu0 0.0
        %1146 = vmatprep.subr.mxu0 0.0
        %1147 = vmatpush1.msra.mxu0 0.0
        %1148 = vmatprep.subr.mxu0 0.0
        %1149 = vmatpush1.msra.mxu0 0.0
        %1150 = vmatprep.subr.mxu0 0.0
        %1151 = vmatpush1.msra.mxu0 0.0
        %1152 = vmatprep.subr.mxu0 0.0
        %1153 = vmatpush1.msra.mxu0 0.0
        %1154 = vmatprep.subr.mxu0 0.0
        %1155 = vmatpush1.msra.mxu0 0.0
        %1156 = vmatprep.subr.mxu0 0.0
        %1157 = vmatpush1.msra.mxu0 0.0
        %1158 = vmatprep.subr.mxu0 0.0
        %1159 = vmatpush1.msra.mxu0 0.0
        %1160 = vmatprep.subr.mxu0 0.0
        %1161 = vmatpush1.msra.mxu0 0.0
        %1162 = vmatprep.subr.mxu0 0.0
        %1163 = vmatpush1.msra.mxu0 0.0
        %1164 = vmatprep.subr.mxu0 0.0
        %1165 = vmatpush1.msra.mxu0 0.0
        %1166 = vmatprep.mubr.f32.mxu0 0.0
        %1167 = vmatmul.mubr.f32.gmra.mrb[0].mxu0 %v1098
        %v1168 = vpop.f32.mrb[0].mxu0
        %v1169 = vadd.f32 %v1090, %v1168
        %v1170 = vpop.f32.mrb[0].mxu0
        %1171 = vmatprep.mubr.f32.mxu0 0.0
        %1172 = vmatmul.mubr.f32.gmra.mrb[0].mxu0 %v1100
        %v1173 = vpop.f32.mrb[0].mxu0
        %v1174 = vadd.f32 %v1095, %v1173
        %v1175 = vpop.f32.mrb[0].mxu0
        %1176 = vdwg.mxu0
        %v1177 = vld [vmem:[%s6] sm:$0x1]
        %v1179 = vlaneseq
        %v1180 = vshrl.u32 %v1179, 7
        %v1181 = vsub.s32 0, %v1180
        %v1182 = vrot.slane %v1177, %v1181
        %v1184 = vadd.f32 %v1169, %v1182
        %v1185 = vadd.f32 %v1174, %v1182
        %v1186 = vmax.f32 %v1184, 0.0
        %v1187 = vmax.f32 %v1185, 0.0
        %s1188 = scalar_lea.vmem %s5, 128
        %v1189 = vld [vmem:[%s1188] sm:$0xff]
        %v1190 = vld [vmem:[%s1188 + $0x8] sm:$0xff]
        %v1191 = vld [vmem:[%s1188 + $0x10] sm:$0xff]
        %v1192 = vld [vmem:[%s1188 + $0x18] sm:$0xff]
        %v1193 = vld [vmem:[%s1188 + $0x20] sm:$0xff]
        %v1194 = vld [vmem:[%s1188 + $0x28] sm:$0xff]
        %v1195 = vld [vmem:[%s1188 + $0x30] sm:$0xff]
        %v1196 = vld [vmem:[%s1188 + $0x38] sm:$0xff]
        %s1197 = scalar_lea.vmem %s5, 192
        %v1198 = vld [vmem:[%s1197] sm:$0xff]
        %v1199 = vld [vmem:[%s1197 + $0x8] sm:$0xff]
        %v1200 = vld [vmem:[%s1197 + $0x10] sm:$0xff]
        %v1201 = vld [vmem:[%s1197 + $0x18] sm:$0xff]
        %v1202 = vld [vmem:[%s1197 + $0x20] sm:$0xff]
        %v1203 = vld [vmem:[%s1197 + $0x28] sm:$0xff]
        %v1204 = vld [vmem:[%s1197 + $0x30] sm:$0xff]
        %v1205 = vld [vmem:[%s1197 + $0x38] sm:$0xff]
        %v1206 = vrot.slane %v991, 2
        %v1207 = vrot.slane %v992, 2
        %v1208 = vsel %vm532, %v1206, %v1207
        %v1209 = vrot.slane %v993, 2
        %v1210 = vsel %vm532, %v1207, %v1209
        %v1211 = vsel %vm350, %v1208, 0
        %v1213 = vsel %vm350, %v1210, 0
        %1215 = vmatprep.subr.mxu0 0.0
        %1216 = vmatpush1.msra.mxu0 %v1198
        %1217 = vmatprep.subr.mxu0 0.0
        %1218 = vmatpush1.msra.mxu0 %v1199
        %1219 = vmatprep.subr.mxu0 0.0
        %1220 = vmatpush1.msra.mxu0 %v1200
        %1221 = vmatprep.subr.mxu0 0.0
        %1222 = vmatpush1.msra.mxu0 %v1201
        %1223 = vmatprep.subr.mxu0 0.0
        %1224 = vmatpush1.msra.mxu0 %v1202
        %1225 = vmatprep.subr.mxu0 0.0
        %1226 = vmatpush1.msra.mxu0 %v1203
        %1227 = vmatprep.subr.mxu0 0.0
        %1228 = vmatpush1.msra.mxu0 %v1204
        %1229 = vmatprep.subr.mxu0 0.0
        %1230 = vmatpush1.msra.mxu0 %v1205
        %1231 = vmatprep.subr.mxu0 0.0
        %1232 = vmatpush1.msra.mxu0 0.0
        %1233 = vmatprep.subr.mxu0 0.0
        %1234 = vmatpush1.msra.mxu0 0.0
        %1235 = vmatprep.subr.mxu0 0.0
        %1236 = vmatpush1.msra.mxu0 0.0
        %1237 = vmatprep.subr.mxu0 0.0
        %1238 = vmatpush1.msra.mxu0 0.0
        %1239 = vmatprep.subr.mxu0 0.0
        %1240 = vmatpush1.msra.mxu0 0.0
        %1241 = vmatprep.subr.mxu0 0.0
        %1242 = vmatpush1.msra.mxu0 0.0
        %1243 = vmatprep.subr.mxu0 0.0
        %1244 = vmatpush1.msra.mxu0 0.0
        %1245 = vmatprep.subr.mxu0 0.0
        %1246 = vmatpush1.msra.mxu0 0.0
        %1247 = vmatprep.subr.mxu0 0.0
        %1248 = vmatpush1.msra.mxu0 0.0
        %1249 = vmatprep.subr.mxu0 0.0
        %1250 = vmatpush1.msra.mxu0 0.0
        %1251 = vmatprep.subr.mxu0 0.0
        %1252 = vmatpush1.msra.mxu0 0.0
        %1253 = vmatprep.subr.mxu0 0.0
        %1254 = vmatpush1.msra.mxu0 0.0
        %1255 = vmatprep.subr.mxu0 0.0
        %1256 = vmatpush1.msra.mxu0 0.0
        %1257 = vmatprep.subr.mxu0 0.0
        %1258 = vmatpush1.msra.mxu0 0.0
        %1259 = vmatprep.subr.mxu0 0.0
        %1260 = vmatpush1.msra.mxu0 0.0
        %1261 = vmatprep.subr.mxu0 0.0
        %1262 = vmatpush1.msra.mxu0 0.0
        %1263 = vmatprep.subr.mxu0 0.0
        %1264 = vmatpush1.msra.mxu0 0.0
        %1265 = vmatprep.subr.mxu0 0.0
        %1266 = vmatpush1.msra.mxu0 0.0
        %1267 = vmatprep.subr.mxu0 0.0
        %1268 = vmatpush1.msra.mxu0 0.0
        %1269 = vmatprep.subr.mxu0 0.0
        %1270 = vmatpush1.msra.mxu0 0.0
        %1271 = vmatprep.subr.mxu0 0.0
        %1272 = vmatpush1.msra.mxu0 0.0
        %1273 = vmatprep.subr.mxu0 0.0
        %1274 = vmatpush1.msra.mxu0 0.0
        %1275 = vmatprep.subr.mxu0 0.0
        %1276 = vmatpush1.msra.mxu0 0.0
        %1277 = vmatprep.subr.mxu0 0.0
        %1278 = vmatpush1.msra.mxu0 0.0
        %1279 = vmatprep.mubr.f32.mxu0 0.0
        %1280 = vmatmul.mubr.f32.gmra.mrb[0].mxu0 %v1211
        %v1281 = vpop.f32.mrb[0].mxu0
        %v1282 = vadd.f32 0.0, %v1281
        %v1283 = vpop.f32.mrb[0].mxu0
        %1284 = vmatprep.mubr.f32.mxu0 0.0
        %1285 = vmatmul.mubr.f32.gmra.mrb[0].mxu0 %v1213
        %v1286 = vpop.f32.mrb[0].mxu0
        %v1287 = vadd.f32 0.0, %v1286
        %v1288 = vpop.f32.mrb[0].mxu0
        %1289 = vdwg.mxu0
        %1290 = vmatprep.subr.mxu0 0.0
        %1291 = vmatpush1.msra.mxu0 %v1189
        %1292 = vmatprep.subr.mxu0 0.0
        %1293 = vmatpush1.msra.mxu0 %v1190
        %1294 = vmatprep.subr.mxu0 0.0
        %1295 = vmatpush1.msra.mxu0 %v1191
        %1296 = vmatprep.subr.mxu0 0.0
        %1297 = vmatpush1.msra.mxu0 %v1192
        %1298 = vmatprep.subr.mxu0 0.0
        %1299 = vmatpush1.msra.mxu0 %v1193
        %1300 = vmatprep.subr.mxu0 0.0
        %1301 = vmatpush1.msra.mxu0 %v1194
        %1302 = vmatprep.subr.mxu0 0.0
        %1303 = vmatpush1.msra.mxu0 %v1195
        %1304 = vmatprep.subr.mxu0 0.0
        %1305 = vmatpush1.msra.mxu0 %v1196
        %1306 = vmatprep.subr.mxu0 0.0
        %1307 = vmatpush1.msra.mxu0 0.0
        %1308 = vmatprep.subr.mxu0 0.0
        %1309 = vmatpush1.msra.mxu0 0.0
        %1310 = vmatprep.subr.mxu0 0.0
        %1311 = vmatpush1.msra.mxu0 0.0
        %1312 = vmatprep.subr.mxu0 0.0
        %1313 = vmatpush1.msra.mxu0 0.0
        %1314 = vmatprep.subr.mxu0 0.0
        %1315 = vmatpush1.msra.mxu0 0.0
        %1316 = vmatprep.subr.mxu0 0.0
        %1317 = vmatpush1.msra.mxu0 0.0
        %1318 = vmatprep.subr.mxu0 0.0
        %1319 = vmatpush1.msra.mxu0 0.0
        %1320 = vmatprep.subr.mxu0 0.0
        %1321 = vmatpush1.msra.mxu0 0.0
        %1322 = vmatprep.subr.mxu0 0.0
        %1323 = vmatpush1.msra.mxu0 0.0
        %1324 = vmatprep.subr.mxu0 0.0
        %1325 = vmatpush1.msra.mxu0 0.0
        %1326 = vmatprep.subr.mxu0 0.0
        %1327 = vmatpush1.msra.mxu0 0.0
        %1328 = vmatprep.subr.mxu0 0.0
        %1329 = vmatpush1.msra.mxu0 0.0
        %1330 = vmatprep.subr.mxu0 0.0
        %1331 = vmatpush1.msra.mxu0 0.0
        %1332 = vmatprep.subr.mxu0 0.0
        %1333 = vmatpush1.msra.mxu0 0.0
        %1334 = vmatprep.subr.mxu0 0.0
        %1335 = vmatpush1.msra.mxu0 0.0
        %1336 = vmatprep.subr.mxu0 0.0
        %1337 = vmatpush1.msra.mxu0 0.0
        %1338 = vmatprep.subr.mxu0 0.0
        %1339 = vmatpush1.msra.mxu0 0.0
        %1340 = vmatprep.subr.mxu0 0.0
        %1341 = vmatpush1.msra.mxu0 0.0
        %1342 = vmatprep.subr.mxu0 0.0
        %1343 = vmatpush1.msra.mxu0 0.0
        %1344 = vmatprep.subr.mxu0 0.0
        %1345 = vmatpush1.msra.mxu0 0.0
        %1346 = vmatprep.subr.mxu0 0.0
        %1347 = vmatpush1.msra.mxu0 0.0
        %1348 = vmatprep.subr.mxu0 0.0
        %1349 = vmatpush1.msra.mxu0 0.0
        %1350 = vmatprep.subr.mxu0 0.0
        %1351 = vmatpush1.msra.mxu0 0.0
        %1352 = vmatprep.subr.mxu0 0.0
        %1353 = vmatpush1.msra.mxu0 0.0
        %1354 = vmatprep.mubr.f32.mxu0 0.0
        %1355 = vmatmul.mubr.f32.gmra.mrb[0].mxu0 %v1019
        %v1356 = vpop.f32.mrb[0].mxu0
        %v1357 = vadd.f32 %v1282, %v1356
        %v1358 = vpop.f32.mrb[0].mxu0
        %1359 = vmatprep.mubr.f32.mxu0 0.0
        %1360 = vmatmul.mubr.f32.gmra.mrb[0].mxu0 %v1021
        %v1361 = vpop.f32.mrb[0].mxu0
        %v1362 = vadd.f32 %v1287, %v1361
        %v1363 = vpop.f32.mrb[0].mxu0
        %1364 = vdwg.mxu0
        %v1365 = vadd.f32 %v1357, %v1182
        %v1366 = vadd.f32 %v1362, %v1182
        %v1367 = vmax.f32 %v1365, 0.0
        %v1368 = vmax.f32 %v1366, 0.0
        %1369 = vst [vmem:[%s317] sm:$0xff] %v1186
        %1370 = vst [vmem:[%s317 + $0x8] sm:$0xff] %v1367
        %1371 = vst [vmem:[%s317 + $0x10] sm:$0xff] %v1187
        %1372 = vst [vmem:[%s317 + $0x18] sm:$0xff] %v1368
        %s1373 = smul.u32 2, %s24
        %p1374 = scmp.lt.s32.totalorder %s23, 1
        %s1375 = scalar_select %p1374, %s23, 1
        %p1376 = scmp.lt.s32.totalorder %s1373, 1
        %s1377 = scalar_select %p1376, %s1373, 1
        %s1378 = smul.addr %s1377, 2
        %s1379 = smul.addr %s1375, 4
        %s1380 = sadd.s32 %s1378, %s1379
        %s1381 = smul.addr %s1380, 8
        %s1382 = scalar_lea.vmem %s7, %s1381
        // Predicated region
        $region53: #{residual_upsample_block.1} parent=47 // pred_check
          %p1383 = pneg %p203
        $region54: #{residual_upsample_block.1} parent=47 // pred_check_branch
          %1385 = sbr.rel (%p1383) target = $region56
        $region55: #{residual_upsample_block.1} parent=47 // pred_region
          %s1386 = smul.u32 2, %s24
        $region56: #{residual_upsample_block.1} parent=47 // pred_fallthru
          _
      $region48: #{residual_upsample_block.1} parent=5 // pred_fallthru
        _
      %p1387 = scmp.le.s32.totalorder 2, %s14
      // Predicated region
      $region57: #{residual_upsample_block.1} parent=5 // pred_check
        %p1388 = pneg %p1387
      $region58: #{residual_upsample_block.1} parent=5 // pred_check_branch
        %1390 = sbr.rel (%p1388) target = $region60
      $region59: #{residual_upsample_block.1} parent=5 // pred_region
        %s1391 = ssub.s32 %s14, 2
        // Predicated region
        $region61: #{residual_upsample_block.1} parent=59 // pred_check
          %p1392 = pneg %p209
        $region62: #{residual_upsample_block.1} parent=59 // pred_check_branch
          %1394 = sbr.rel (%p1392) target = $region64
        $region63: #{residual_upsample_block.1} parent=59 // pred_region
          %s1395 = smul.u32 2, %s26
          %p1396 = scmp.lt.s32.totalorder %s25, 1
          %s1397 = scalar_select %p1396, %s25, 1
          %p1398 = scmp.lt.s32.totalorder %s1395, 1
          %s1399 = scalar_select %p1398, %s1395, 1
          %s1400 = smul.addr %s1399, 2
          %s1401 = smul.addr %s1397, 4
          %s1402 = sadd.s32 %s1400, %s1401
          %s1403 = smul.addr %s1402, 8
          %s1404 = scalar_lea.vmem %s7, %s1403
        $region64: #{residual_upsample_block.1} parent=59 // pred_fallthru
          _
      $region60: #{residual_upsample_block.1} parent=5 // pred_fallthru
        _
    $region6: #{residual_upsample_block.1} parent=1 // loop_footer
      %s18 = sadd.s32 1, %s14
    $region7: #{residual_upsample_block.1} parent=1 // loop_footer_branch
      %13 = sbr.rel target = $region3
    $region8: #{residual_upsample_block.1} parent=1 // loop_exit
      _
    %1405 = vsyncpa [#allocation3], 1
    %s1406 = scalar_lea.sflag [#allocation3], 1
    %1407 = vsyncpa %s1406, 1

</llo_original>
